<compile_context>
chip_gen: v7x
topology: tpu7x:2x2x1
jax: 0.10.0
libtpu: 0.0.40
codegen_flags: <defaults>
</compile_context>

<pallas_src>
import jax
import jax.numpy as jnp
from jax.experimental import pallas as pl
from jax.experimental.pallas import tpu as pltpu

H = 248            # logical hidden size (matches PyTorch module)
HP = 256           # padded hidden size (multiple of 128 -> lane aligned, single MXU K tile)
G = 4 * HP         # fused gate width (i, f, o, g)
OUT = 2            # logical output features
OUT_P = 128        # padded output width (lane-dense final store)


# --------------------------------------------------------------------------------------
# Pallas kernel: the serial recurrence (both LSTM layers) + final linear, in one invocation
# --------------------------------------------------------------------------------------
def lstm_recurrent_kernel(xproj_ref,   # (T, B, G)  hoisted layer-0 pre-activations: x @ Wih0 + b0
                          whh0_ref,    # (HP, G)    layer-0 hidden -> gates (fused, padded)
                          w1_ref,      # (2*HP, G)  layer-1 [Wih1; Whh1] (fused, padded)
                          b1_ref,      # (1, G)     layer-1 combined bias
                          wlin_ref,    # (HP, OUT_P)
                          blin_ref,    # (1, OUT_P)
                          out_ref,     # (B, OUT_P)
                          hcat,        # scratch (B, 2*HP): [h0 | h1]
                          c0,          # scratch (B, HP)
                          c1):         # scratch (B, HP)
    T = xproj_ref.shape[0]

    hcat[...] = jnp.zeros_like(hcat)
    c0[...] = jnp.zeros_like(c0)
    c1[...] = jnp.zeros_like(c1)

    def gates(z, c):
        # Single fused activation pass over the (B, 4*HP) pre-activation slab.
        # Gate order in the fused layout is (i, f, o, g): sigmoid on the first 3*HP lanes,
        # tanh on the last HP lanes.
        s = jax.nn.sigmoid(z[:, :3 * HP])
        g = jnp.tanh(z[:, 3 * HP:])
        i = s[:, 0 * HP:1 * HP]
        f = s[:, 1 * HP:2 * HP]
        o = s[:, 2 * HP:3 * HP]
        c_new = f * c + i * g
        h_new = o * jnp.tanh(c_new)
        return h_new, c_new

    def step(t, carry):
        # ---- layer 0: the x-projection (+bias) was hoisted out of the loop; only the
        #      h-recurrence matmul (M=B, K=HP, N=4*HP) stays on the serial path.
        z0 = xproj_ref[t] + jnp.dot(hcat[:, :HP], whh0_ref[...],
                                    preferred_element_type=jnp.float32)
        h0_new, c0_new = gates(z0, c0[...])
        hcat[:, :HP] = h0_new
        c0[...] = c0_new

        # ---- layer 1: one fused matmul of the [h0 | h1] slab against [Wih1; Whh1].
        z1 = jnp.dot(hcat[...], w1_ref[...],
                     preferred_element_type=jnp.float32) + b1_ref[...]
        h1_new, c1_new = gates(z1, c1[...])
        hcat[:, HP:] = h1_new
        c1[...] = c1_new
        return carry

    jax.lax.fori_loop(0, T, step, 0)

    # dropout(p=0.5) is identity in eval mode.
    # TODO(synk): training-mode stochastic dropout (pltpu.prng_*) not implemented.
    out_ref[...] = (jnp.dot(hcat[:, HP:], wlin_ref[...],
                            preferred_element_type=jnp.float32)
                    + blin_ref[...])


# --------------------------------------------------------------------------------------
# Wrapper
# --------------------------------------------------------------------------------------
def simple_lstm_forward(x, packed):
    """x: (B, T, D) float32, batch-first (matches PyTorch forward). Returns (B, OUT)."""
    wih0_f, b0_f, whh0_f, w1_f, b1_f, wlin_p, blin_p = packed
    B, T, D = x.shape

    # Hoisted layer-0 input projection: no sequential dependence, so do it as ONE big
    # (T*B, D) @ (D, 4*HP) matmul with the layer-0 bias folded in (M = T*B fills the MXU
    # far better than M = B per timestep).
    x_tm = jnp.transpose(x, (1, 0, 2)).reshape(T * B, D)           # time-major rows
    xproj = (jnp.dot(x_tm, wih0_f, preferred_element_type=jnp.float32)
             + b0_f).reshape(T, B, G)

    grid_spec = pltpu.PrefetchScalarGridSpec(
        num_scalar_prefetch=0,
        grid=(1,),   # single invocation: the time loop lives inside the kernel
        in_specs=[
            pl.BlockSpec((T, B, G), lambda i: (0, 0, 0)),      # xproj (whole sequence resident)
            pl.BlockSpec((HP, G), lambda i: (0, 0)),           # whh0
            pl.BlockSpec((2 * HP, G), lambda i: (0, 0)),       # [wih1; whh1]
            pl.BlockSpec((1, G), lambda i: (0, 0)),            # b1
            pl.BlockSpec((HP, OUT_P), lambda i: (0, 0)),       # linear weight (padded)
            pl.BlockSpec((1, OUT_P), lambda i: (0, 0)),        # linear bias (padded)
        ],
        out_specs=pl.BlockSpec((B, OUT_P), lambda i: (0, 0)),
        scratch_shapes=[
            pltpu.VMEM((B, 2 * HP), jnp.float32),              # [h0 | h1]
            pltpu.VMEM((B, HP), jnp.float32),                  # c0
            pltpu.VMEM((B, HP), jnp.float32),                  # c1
        ],
    )

    out_p = pl.pallas_call(
        lstm_recurrent_kernel,
        out_shape=jax.ShapeDtypeStruct((B, OUT_P), jnp.float32),
        grid_spec=grid_spec,
        compiler_params=pltpu.CompilerParams(
            dimension_semantics=("arbitrary",)),
    )(xproj, whh0_f, w1_f, b1_f, wlin_p, blin_p)

    return out_p[:, :OUT]


# --------------------------------------------------------------------------------------
# Parameter handling: PyTorch-style logical params  +  packing into the fused kernel layout
# --------------------------------------------------------------------------------------
def init_params(key, in_features):
    """PyTorch-style init: LSTM & Linear params ~ U(-1/sqrt(H), 1/sqrt(H)); gate order (i,f,g,o)."""
    k = 1.0 / jnp.sqrt(jnp.float32(H))
    keys = jax.random.split(key, 10)
    u = lambda kk, shape: jax.random.uniform(kk, shape, jnp.float32, -k, k)
    w_ih0 = u(keys[0], (4 * H, in_features))   # PyTorch layout (4H, in)
    w_hh0 = u(keys[1], (4 * H, H))
    b_ih0 = u(keys[2], (4 * H,))
    b_hh0 = u(keys[3], (4 * H,))
    w_ih1 = u(keys[4], (4 * H, H))
    w_hh1 = u(keys[5], (4 * H, H))
    b_ih1 = u(keys[6], (4 * H,))
    b_hh1 = u(keys[7], (4 * H,))
    w_lin = u(keys[8], (OUT, H))               # PyTorch Linear layout (out, in)
    b_lin = u(keys[9], (OUT,))
    return (w_ih0, w_hh0, b_ih0, b_hh0, w_ih1, w_hh1, b_ih1, b_hh1, w_lin, b_lin)


def _fuse_gates(w, in_pad):
    """(4H, in) PyTorch gate-stacked (i,f,g,o) -> (in_pad, 4*HP) fused, reordered to (i,f,o,g),
    zero-padded rows/lanes so padded state lanes stay exactly zero through the recurrence."""
    in_dim = w.shape[1]
    gi, gf, gg, go = jnp.split(w, 4, axis=0)
    cols = []
    for gate in (gi, gf, go, gg):
        gt = jnp.pad(gate.T, ((0, in_pad - in_dim), (0, HP - H)))
        cols.append(gt)
    return jnp.concatenate(cols, axis=1)


def _fuse_bias(b):
    bi, bf, bg, bo = jnp.split(b, 4)
    parts = [jnp.pad(g, (0, HP - H)) for g in (bi, bf, bo, bg)]
    return jnp.concatenate(parts).reshape(1, G)


def pack_params(p):
    (w_ih0, w_hh0, b_ih0, b_hh0,
     w_ih1, w_hh1, b_ih1, b_hh1, w_lin, b_lin) = p
    d = w_ih0.shape[1]
    wih0_f = _fuse_gates(w_ih0, in_pad=d)                      # (D, 4*HP)
    b0_f = _fuse_bias(b_ih0 + b_hh0)                           # (1, 4*HP)
    whh0_f = _fuse_gates(w_hh0, in_pad=HP)                     # (HP, 4*HP)
    w1_f = jnp.concatenate([_fuse_gates(w_ih1, in_pad=HP),
                            _fuse_gates(w_hh1, in_pad=HP)], axis=0)   # (2*HP, 4*HP)
    b1_f = _fuse_bias(b_ih1 + b_hh1)                           # (1, 4*HP)
    wlin_p = jnp.pad(w_lin.T, ((0, HP - H), (0, OUT_P - OUT))) # (HP, OUT_P)
    blin_p = jnp.pad(b_lin, (0, OUT_P - OUT)).reshape(1, OUT_P)
    return (wih0_f, b0_f, whh0_f, w1_f, b1_f, wlin_p, blin_p)


# --------------------------------------------------------------------------------------
# Pure-JAX reference with PyTorch semantics (eval mode: dropout = identity)
# --------------------------------------------------------------------------------------
def lstm_ref(x, p):
    (w_ih0, w_hh0, b_ih0, b_hh0,
     w_ih1, w_hh1, b_ih1, b_hh1, w_lin, b_lin) = p
    B, T, D = x.shape

    def cell(x_t, h, c, w_ih, w_hh, b_ih, b_hh):
        z = x_t @ w_ih.T + h @ w_hh.T + b_ih + b_hh
        i = jax.nn.sigmoid(z[:, 0:H])
        f = jax.nn.sigmoid(z[:, H:2 * H])
        g = jnp.tanh(z[:, 2 * H:3 * H])
        o = jax.nn.sigmoid(z[:, 3 * H:4 * H])
        c_new = f * c + i * g
        return o * jnp.tanh(c_new), c_new

    h0 = jnp.zeros((B, H), jnp.float32)
    c0 = jnp.zeros((B, H), jnp.float32)
    h1 = jnp.zeros((B, H), jnp.float32)
    c1 = jnp.zeros((B, H), jnp.float32)
    for t in range(T):
        h0, c0 = cell(x[:, t], h0, c0, w_ih0, w_hh0, b_ih0, b_hh0)
        h1, c1 = cell(h0, h1, c1, w_ih1, w_hh1, b_ih1, b_hh1)
    return h1 @ w_lin.T + b_lin


if __name__ == "__main__":
    B, T, D = 2, 8, 16
    key = jax.random.PRNGKey(0)
    kx, kp = jax.random.split(key)
    x = jax.random.normal(kx, (B, T, D), jnp.float32)

    logical = init_params(kp, D)
    packed = pack_params(logical)

    out = simple_lstm_forward(x, packed)
    out = jax.block_until_ready(out)
    assert out.shape == (B, OUT), out.shape

    ref = jax.block_until_ready(lstm_ref(x, logical))
    assert jnp.allclose(out, ref, rtol=2e-3, atol=2e-3), (out, ref)

    print("KERNEL_OK")
</pallas_src>

<mosaic_0001>
module attributes {stable_mosaic.version = 11 : i64} {
  func.func @lstm_recurrent_kernel(%arg0: i32, %arg1: memref<8x2x1024xf32, #tpu.memory_space<vmem>>, %arg2: memref<256x1024xf32, #tpu.memory_space<vmem>>, %arg3: memref<512x1024xf32, #tpu.memory_space<vmem>>, %arg4: memref<1x1024xf32, #tpu.memory_space<vmem>>, %arg5: memref<256x128xf32, #tpu.memory_space<vmem>>, %arg6: memref<1x128xf32, #tpu.memory_space<vmem>>, %arg7: memref<2x128xf32, #tpu.memory_space<vmem>>, %arg8: memref<2x512xf32, #tpu.memory_space<vmem>>, %arg9: memref<2x256xf32, #tpu.memory_space<vmem>>, %arg10: memref<2x256xf32, #tpu.memory_space<vmem>>) attributes {dimension_semantics = [#tpu.dimension_semantics<arbitrary>], iteration_bounds = array<i64: 1>, scalar_prefetch = 0 : i64, scratch_operands = 3 : i64, tpu.core_type = #tpu.core_type<tc>, window_params = [{pipeline_mode = #tpu.pipeline_mode<synchronous>, transform_indices = @transform_0, window_bounds = array<i64: 8, 2, 1024>}, {pipeline_mode = #tpu.pipeline_mode<synchronous>, transform_indices = @transform_1, window_bounds = array<i64: 256, 1024>}, {pipeline_mode = #tpu.pipeline_mode<synchronous>, transform_indices = @transform_2, window_bounds = array<i64: 512, 1024>}, {pipeline_mode = #tpu.pipeline_mode<synchronous>, transform_indices = @transform_3, window_bounds = array<i64: 1, 1024>}, {pipeline_mode = #tpu.pipeline_mode<synchronous>, transform_indices = @transform_4, window_bounds = array<i64: 256, 128>}, {pipeline_mode = #tpu.pipeline_mode<synchronous>, transform_indices = @transform_5, window_bounds = array<i64: 1, 128>}, {pipeline_mode = #tpu.pipeline_mode<synchronous>, transform_indices = @transform_6, window_bounds = array<i64: 2, 128>}]} {
    %cst = arith.constant 0.000000e+00 : f32
    %0 = vector.broadcast %cst : f32 to vector<2x512xf32>
    %c0 = arith.constant 0 : index
    %c0_0 = arith.constant 0 : index
    %1 = vector.load %arg8[%c0, %c0_0] : memref<2x512xf32, #tpu.memory_space<vmem>>, vector<2x512xf32>
    tpu.vector_store %arg8[%c0, %c0_0], %0 {strides = array<i32>} : memref<2x512xf32, #tpu.memory_space<vmem>>, vector<2x512xf32>,
    %cst_1 = arith.constant 0.000000e+00 : f32
    %2 = vector.broadcast %cst_1 : f32 to vector<2x256xf32>
    %c0_2 = arith.constant 0 : index
    %c0_3 = arith.constant 0 : index
    %3 = vector.load %arg9[%c0_2, %c0_3] : memref<2x256xf32, #tpu.memory_space<vmem>>, vector<2x256xf32>
    tpu.vector_store %arg9[%c0_2, %c0_3], %2 {strides = array<i32>} : memref<2x256xf32, #tpu.memory_space<vmem>>, vector<2x256xf32>,
    %cst_4 = arith.constant 0.000000e+00 : f32
    %4 = vector.broadcast %cst_4 : f32 to vector<2x256xf32>
    %c0_5 = arith.constant 0 : index
    %c0_6 = arith.constant 0 : index
    %5 = vector.load %arg10[%c0_5, %c0_6] : memref<2x256xf32, #tpu.memory_space<vmem>>, vector<2x256xf32>
    tpu.vector_store %arg10[%c0_5, %c0_6], %4 {strides = array<i32>} : memref<2x256xf32, #tpu.memory_space<vmem>>, vector<2x256xf32>,
    %c0_i32 = arith.constant 0 : i32
    %c8_i32 = arith.constant 8 : i32
    %6 = arith.addi %c0_i32, %c8_i32 : i32
    %c1_i32 = arith.constant 1 : i32
    scf.for %arg11 = %c0_i32 to %6 step %c1_i32  : i32 {
      %14 = arith.index_cast %arg11 : i32 to index
      %c0_16 = arith.constant 0 : index
      %c0_17 = arith.constant 0 : index
      %15 = vector.load %arg1[%14, %c0_16, %c0_17] : memref<8x2x1024xf32, #tpu.memory_space<vmem>>, vector<1x2x1024xf32>
      %16 = vector.shape_cast %15 : vector<1x2x1024xf32> to vector<2x1024xf32>
      %c0_18 = arith.constant 0 : index
      %c0_19 = arith.constant 0 : index
      %17 = vector.load %arg8[%c0_18, %c0_19] : memref<2x512xf32, #tpu.memory_space<vmem>>, vector<2x256xf32>
      %c0_20 = arith.constant 0 : index
      %c0_21 = arith.constant 0 : index
      %18 = vector.load %arg2[%c0_20, %c0_21] : memref<256x1024xf32, #tpu.memory_space<vmem>>, vector<256x1024xf32>
      %cst_22 = arith.constant dense<0.000000e+00> : vector<2x1024xf32>
      %19 = tpu.matmul %17, %18, %cst_22 {dimension_numbers = #tpu.dot_dimension_numbers<[1], [0], [0], [1], [0, 0, 1, 1], [], []>} : vector<2x256xf32>, vector<256x1024xf32>, vector<2x1024xf32> -> vector<2x1024xf32>
      %20 = arith.addf %16, %19 : vector<2x1024xf32>
      %c0_23 = arith.constant 0 : index
      %c0_24 = arith.constant 0 : index
      %21 = vector.load %arg9[%c0_23, %c0_24] : memref<2x256xf32, #tpu.memory_space<vmem>>, vector<2x256xf32>
      %22 = vector.extract_strided_slice %20 {offsets = [0, 0], sizes = [2, 768], strides = [1, 1]} : vector<2x1024xf32> to vector<2x768xf32>
      %23 = arith.negf %22 : vector<2x768xf32>
      %24 = math.exp %23 : vector<2x768xf32>
      %cst_25 = arith.constant 1.000000e+00 : f32
      %25 = vector.broadcast %cst_25 : f32 to vector<2x768xf32>
      %26 = arith.addf %25, %24 : vector<2x768xf32>
      %27 = arith.divf %25, %26 : vector<2x768xf32>
      %28 = vector.extract_strided_slice %20 {offsets = [0, 768], sizes = [2, 256], strides = [1, 1]} : vector<2x1024xf32> to vector<2x256xf32>
      %29 = math.tanh %28 : vector<2x256xf32>
      %30 = vector.extract_strided_slice %27 {offsets = [0, 0], sizes = [2, 256], strides = [1, 1]} : vector<2x768xf32> to vector<2x256xf32>
      %31 = vector.extract_strided_slice %27 {offsets = [0, 256], sizes = [2, 256], strides = [1, 1]} : vector<2x768xf32> to vector<2x256xf32>
      %32 = vector.extract_strided_slice %27 {offsets = [0, 512], sizes = [2, 256], strides = [1, 1]} : vector<2x768xf32> to vector<2x256xf32>
      %33 = arith.mulf %31, %21 : vector<2x256xf32>
      %34 = arith.mulf %30, %29 : vector<2x256xf32>
      %35 = arith.addf %33, %34 : vector<2x256xf32>
      %36 = math.tanh %35 : vector<2x256xf32>
      %37 = arith.mulf %32, %36 : vector<2x256xf32>
      %c0_26 = arith.constant 0 : index
      %c0_27 = arith.constant 0 : index
      %38 = vector.load %arg8[%c0_26, %c0_27] : memref<2x512xf32, #tpu.memory_space<vmem>>, vector<2x256xf32>
      tpu.vector_store %arg8[%c0_26, %c0_27], %37 {strides = array<i32>} : memref<2x512xf32, #tpu.memory_space<vmem>>, vector<2x256xf32>,
      %c0_28 = arith.constant 0 : index
      %c0_29 = arith.constant 0 : index
      %39 = vector.load %arg9[%c0_28, %c0_29] : memref<2x256xf32, #tpu.memory_space<vmem>>, vector<2x256xf32>
      tpu.vector_store %arg9[%c0_28, %c0_29], %35 {strides = array<i32>} : memref<2x256xf32, #tpu.memory_space<vmem>>, vector<2x256xf32>,
      %c0_30 = arith.constant 0 : index
      %c0_31 = arith.constant 0 : index
      %40 = vector.load %arg8[%c0_30, %c0_31] : memref<2x512xf32, #tpu.memory_space<vmem>>, vector<2x512xf32>
      %c0_32 = arith.constant 0 : index
      %c0_33 = arith.constant 0 : index
      %41 = vector.load %arg3[%c0_32, %c0_33] : memref<512x1024xf32, #tpu.memory_space<vmem>>, vector<512x1024xf32>
      %cst_34 = arith.constant dense<0.000000e+00> : vector<2x1024xf32>
      %42 = tpu.matmul %40, %41, %cst_34 {dimension_numbers = #tpu.dot_dimension_numbers<[1], [0], [0], [1], [0, 0, 1, 1], [], []>} : vector<2x512xf32>, vector<512x1024xf32>, vector<2x1024xf32> -> vector<2x1024xf32>
      %c0_35 = arith.constant 0 : index
      %c0_36 = arith.constant 0 : index
      %43 = vector.load %arg4[%c0_35, %c0_36] : memref<1x1024xf32, #tpu.memory_space<vmem>>, vector<1x1024xf32>
      %44 = vector.broadcast %43 : vector<1x1024xf32> to vector<2x1024xf32>
      %45 = arith.addf %42, %44 : vector<2x1024xf32>
      %c0_37 = arith.constant 0 : index
      %c0_38 = arith.constant 0 : index
      %46 = vector.load %arg10[%c0_37, %c0_38] : memref<2x256xf32, #tpu.memory_space<vmem>>, vector<2x256xf32>
      %47 = vector.extract_strided_slice %45 {offsets = [0, 0], sizes = [2, 768], strides = [1, 1]} : vector<2x1024xf32> to vector<2x768xf32>
      %48 = arith.negf %47 : vector<2x768xf32>
      %49 = math.exp %48 : vector<2x768xf32>
      %cst_39 = arith.constant 1.000000e+00 : f32
      %50 = vector.broadcast %cst_39 : f32 to vector<2x768xf32>
      %51 = arith.addf %50, %49 : vector<2x768xf32>
      %52 = arith.divf %50, %51 : vector<2x768xf32>
      %53 = vector.extract_strided_slice %45 {offsets = [0, 768], sizes = [2, 256], strides = [1, 1]} : vector<2x1024xf32> to vector<2x256xf32>
      %54 = math.tanh %53 : vector<2x256xf32>
      %55 = vector.extract_strided_slice %52 {offsets = [0, 0], sizes = [2, 256], strides = [1, 1]} : vector<2x768xf32> to vector<2x256xf32>
      %56 = vector.extract_strided_slice %52 {offsets = [0, 256], sizes = [2, 256], strides = [1, 1]} : vector<2x768xf32> to vector<2x256xf32>
      %57 = vector.extract_strided_slice %52 {offsets = [0, 512], sizes = [2, 256], strides = [1, 1]} : vector<2x768xf32> to vector<2x256xf32>
      %58 = arith.mulf %56, %46 : vector<2x256xf32>
      %59 = arith.mulf %55, %54 : vector<2x256xf32>
      %60 = arith.addf %58, %59 : vector<2x256xf32>
      %61 = math.tanh %60 : vector<2x256xf32>
      %62 = arith.mulf %57, %61 : vector<2x256xf32>
      %c0_40 = arith.constant 0 : index
      %c256_41 = arith.constant 256 : index
      %63 = vector.load %arg8[%c0_40, %c256_41] : memref<2x512xf32, #tpu.memory_space<vmem>>, vector<2x256xf32>
      tpu.vector_store %arg8[%c0_40, %c256_41], %62 {strides = array<i32>} : memref<2x512xf32, #tpu.memory_space<vmem>>, vector<2x256xf32>,
      %c0_42 = arith.constant 0 : index
      %c0_43 = arith.constant 0 : index
      %64 = vector.load %arg10[%c0_42, %c0_43] : memref<2x256xf32, #tpu.memory_space<vmem>>, vector<2x256xf32>
      tpu.vector_store %arg10[%c0_42, %c0_43], %60 {strides = array<i32>} : memref<2x256xf32, #tpu.memory_space<vmem>>, vector<2x256xf32>,
    }
    %c8_i32_7 = arith.constant 8 : i32
    %c0_8 = arith.constant 0 : index
    %c256 = arith.constant 256 : index
    %7 = vector.load %arg8[%c0_8, %c256] : memref<2x512xf32, #tpu.memory_space<vmem>>, vector<2x256xf32>
    %c0_9 = arith.constant 0 : index
    %c0_10 = arith.constant 0 : index
    %8 = vector.load %arg5[%c0_9, %c0_10] : memref<256x128xf32, #tpu.memory_space<vmem>>, vector<256x128xf32>
    %cst_11 = arith.constant dense<0.000000e+00> : vector<2x128xf32>
    %9 = tpu.matmul %7, %8, %cst_11 {dimension_numbers = #tpu.dot_dimension_numbers<[1], [0], [0], [1], [0, 0, 1, 1], [], []>} : vector<2x256xf32>, vector<256x128xf32>, vector<2x128xf32> -> vector<2x128xf32>
    %c0_12 = arith.constant 0 : index
    %c0_13 = arith.constant 0 : index
    %10 = vector.load %arg6[%c0_12, %c0_13] : memref<1x128xf32, #tpu.memory_space<vmem>>, vector<1x128xf32>
    %11 = vector.broadcast %10 : vector<1x128xf32> to vector<2x128xf32>
    %12 = arith.addf %9, %11 : vector<2x128xf32>
    %c0_14 = arith.constant 0 : index
    %c0_15 = arith.constant 0 : index
    %13 = vector.load %arg7[%c0_14, %c0_15] : memref<2x128xf32, #tpu.memory_space<vmem>>, vector<2x128xf32>
    tpu.vector_store %arg7[%c0_14, %c0_15], %12 {strides = array<i32>} : memref<2x128xf32, #tpu.memory_space<vmem>>, vector<2x128xf32>,
    return
  }
  func.func @transform_0(%arg0: i32) -> (i32, i32, i32) {
    %c0_i32 = arith.constant 0 : i32
    %c0_i32_0 = arith.constant 0 : i32
    %c0_i32_1 = arith.constant 0 : i32
    %c0_i32_2 = arith.constant 0 : i32
    return %c0_i32, %c0_i32_0, %c0_i32_1 : i32, i32, i32
  }
  func.func @transform_1(%arg0: i32) -> (i32, i32) {
    %c0_i32 = arith.constant 0 : i32
    %c0_i32_0 = arith.constant 0 : i32
    %c0_i32_1 = arith.constant 0 : i32
    return %c0_i32, %c0_i32_0 : i32, i32
  }
  func.func @transform_2(%arg0: i32) -> (i32, i32) {
    %c0_i32 = arith.constant 0 : i32
    %c0_i32_0 = arith.constant 0 : i32
    %c0_i32_1 = arith.constant 0 : i32
    return %c0_i32, %c0_i32_0 : i32, i32
  }
  func.func @transform_3(%arg0: i32) -> (i32, i32) {
    %c0_i32 = arith.constant 0 : i32
    %c0_i32_0 = arith.constant 0 : i32
    %c0_i32_1 = arith.constant 0 : i32
    return %c0_i32, %c0_i32_0 : i32, i32
  }
  func.func @transform_4(%arg0: i32) -> (i32, i32) {
    %c0_i32 = arith.constant 0 : i32
    %c0_i32_0 = arith.constant 0 : i32
    %c0_i32_1 = arith.constant 0 : i32
    return %c0_i32, %c0_i32_0 : i32, i32
  }
  func.func @transform_5(%arg0: i32) -> (i32, i32) {
    %c0_i32 = arith.constant 0 : i32
    %c0_i32_0 = arith.constant 0 : i32
    %c0_i32_1 = arith.constant 0 : i32
    return %c0_i32, %c0_i32_0 : i32, i32
  }
  func.func @transform_6(%arg0: i32) -> (i32, i32) {
    %c0_i32 = arith.constant 0 : i32
    %c0_i32_0 = arith.constant 0 : i32
    %c0_i32_1 = arith.constant 0 : i32
    return %c0_i32, %c0_i32_0 : i32, i32
  }
}

</mosaic_0001>

<llo_original>
// kernel: tpu_custom_call.1
$region0: #{tpu_custom_call.1}
  #allocation0 [shape = 'u32[]', space=smem, size = 0x4, offset = 0x4, fixed_abs, tag = 'smem constant byte address 0x4 - core index']
  #allocation1 [shape = 'u32[144,128]{1,0:T(1,128)}', space=vmem, size = 0x12000, scoped, tag = 'internal scratch']
  #allocation2 [shape = 'f32[2,512]{1,0:T(2,128)}', space=vmem, size = 0x1000, scoped, tag = 'scratch operand']
  #allocation3 [shape = 'f32[2,256]{1,0:T(2,128)}', space=vmem, size = 0x800, scoped, tag = 'scratch operand']
  #allocation4 [shape = 'f32[2,256]{1,0:T(2,128)}', space=vmem, size = 0x800, scoped, tag = 'scratch operand']
  %s0 = inlined_call_operand.hbm [shape: f32[8,2,1024], index: 0, kind: input, shape index: {}]
  %s1 = inlined_call_operand.hbm [shape: f32[256,1024], index: 1, kind: input, shape index: {}]
  %s2 = inlined_call_operand.hbm [shape: f32[512,1024], index: 2, kind: input, shape index: {}]
  %s3 = inlined_call_operand.hbm [shape: f32[1,1024], index: 3, kind: input, shape index: {}]
  %s4 = inlined_call_operand.hbm [shape: f32[256,128], index: 4, kind: input, shape index: {}]
  %s5 = inlined_call_operand.hbm [shape: f32[1,128], index: 5, kind: input, shape index: {}]
  %s6 = inlined_call_operand.hbm [shape: f32[2,128], index: 6, kind: output, shape index: {}]
  %s7 = sld [smem:[#allocation0]]
  $region65: #{tpu_custom_call.1} parent=0
    _
  %s9 = ssub.s32 1, %s7
  %s10 = scalar_select 0, %s9, %s7
  $region1: #{tpu_custom_call.1} parent=0
    #allocation5 [shape = 'u8[65536]{0}', space=vmem, size = 0x10000, scoped, tag = 'input window, operand 0, single buffered']
    #allocation6 [shape = 's32[1]{0}', space=sflag, size = 0x4, scoped, tag = 'scoped memory for tpu_custom_call.1']
    #allocation7 [shape = 's32[1]{0}', space=sflag, size = 0x4, scoped, tag = 'scoped memory for tpu_custom_call.1']
    #allocation8 [shape = 'u8[1048576]{0}', space=vmem, size = 0x100000, scoped, tag = 'input window, operand 1, single buffered']
    #allocation9 [shape = 's32[1]{0}', space=sflag, size = 0x4, scoped, tag = 'scoped memory for tpu_custom_call.1']
    #allocation10 [shape = 'u8[2097152]{0}', space=vmem, size = 0x200000, scoped, tag = 'input window, operand 2, single buffered']
    #allocation11 [shape = 'u8[4096]{0}', space=vmem, size = 0x1000, scoped, tag = 'input window, operand 3, single buffered']
    #allocation12 [shape = 's32[1]{0}', space=sflag, size = 0x4, scoped, tag = 'scoped memory for tpu_custom_call.1']
    #allocation13 [shape = 'u8[131072]{0}', space=vmem, size = 0x20000, scoped, tag = 'input window, operand 4, single buffered']
    #allocation14 [shape = 'u8[512]{0}', space=vmem, size = 0x400, scoped, tag = 'input window, operand 5, single buffered']
    #allocation15 [shape = 's32[1]{0}', space=sflag, size = 0x4, scoped, tag = 'scoped memory for tpu_custom_call.1']
    #allocation16 [shape = 'u8[1024]{0}', space=vmem, size = 0x400, scoped, tag = 'output window, operand 0, single buffered']
    %11 = vsyncpa [#allocation6], 0
    %12 = vsyncpa [#allocation9], 0
    %13 = vsyncpa [#allocation12], 0
    %14 = vsyncpa [#allocation15], 0
    %15 = vsyncpa [#allocation7], 0
    // Predicated region
    $region2: #{tpu_custom_call.1} parent=1 // pred_check
      _
    $region3: #{tpu_custom_call.1} parent=1 // pred_check_branch
      %17 = sbr.rel (0) target = $region5
    $region4: #{tpu_custom_call.1} parent=1 // pred_region
      %s19 = ssub.s32 2048, 2048
      %20 = vsyncadd [#allocation6], %s19
      %s21 = sshll.u32 [#allocation5], 4
      %s22 = int_to_ptr.vmem [resolvable:$true] %s21
      %27 = dma.hbm_to_vmem [thread:$0]  %s0, 2048, %s22, [#allocation6], 256, 256, 16
    $region5: #{tpu_custom_call.1} parent=1 // pred_fallthru
      _
    // Predicated region
    $region6: #{tpu_custom_call.1} parent=1 // pred_check
      _
    $region7: #{tpu_custom_call.1} parent=1 // pred_check_branch
      %29 = sbr.rel (0) target = $region9
    $region8: #{tpu_custom_call.1} parent=1 // pred_region
      %s31 = ssub.s32 32768, 32768
      %32 = vsyncadd [#allocation9], %s31
      %s33 = sshll.u32 [#allocation8], 4
      %s34 = int_to_ptr.vmem [resolvable:$true] %s33
      %39 = dma.hbm_to_vmem [thread:$0]  %s1, 32768, %s34, [#allocation9], 1024, 1024, 64
    $region9: #{tpu_custom_call.1} parent=1 // pred_fallthru
      _
    // Predicated region
    $region10: #{tpu_custom_call.1} parent=1 // pred_check
      _
    $region11: #{tpu_custom_call.1} parent=1 // pred_check_branch
      %41 = sbr.rel (0) target = $region13
    $region12: #{tpu_custom_call.1} parent=1 // pred_region
      %s43 = ssub.s32 65536, 65536
      %44 = vsyncadd [#allocation9], %s43
      %s45 = sshll.u32 [#allocation10], 4
      %s46 = int_to_ptr.vmem [resolvable:$true] %s45
      %51 = dma.hbm_to_vmem [thread:$0]  %s2, 65536, %s46, [#allocation9], 1024, 1024, 64
    $region13: #{tpu_custom_call.1} parent=1 // pred_fallthru
      _
    // Predicated region
    $region14: #{tpu_custom_call.1} parent=1 // pred_check
      _
    $region15: #{tpu_custom_call.1} parent=1 // pred_check_branch
      %53 = sbr.rel (0) target = $region17
    $region16: #{tpu_custom_call.1} parent=1 // pred_region
      %s55 = ssub.s32 128, 128
      %56 = vsyncadd [#allocation12], %s55
      %s58 = sshll.u32 [#allocation11], 4
      %s59 = int_to_ptr.vmem [resolvable:$true] %s58
      %61 = dma.hbm_to_vmem [thread:$0]  %s3, 128, %s59, [#allocation12]
    $region17: #{tpu_custom_call.1} parent=1 // pred_fallthru
      _
    // Predicated region
    $region18: #{tpu_custom_call.1} parent=1 // pred_check
      _
    $region19: #{tpu_custom_call.1} parent=1 // pred_check_branch
      %63 = sbr.rel (0) target = $region21
    $region20: #{tpu_custom_call.1} parent=1 // pred_region
      %s65 = ssub.s32 4096, 4096
      %66 = vsyncadd [#allocation12], %s65
      %s67 = sshll.u32 [#allocation13], 4
      %s68 = int_to_ptr.vmem [resolvable:$true] %s67
      %73 = dma.hbm_to_vmem [thread:$0]  %s4, 4096, %s68, [#allocation12], 128, 128, 8
    $region21: #{tpu_custom_call.1} parent=1 // pred_fallthru
      _
    // Predicated region
    $region22: #{tpu_custom_call.1} parent=1 // pred_check
      _
    $region23: #{tpu_custom_call.1} parent=1 // pred_check_branch
      %75 = sbr.rel (0) target = $region25
    $region24: #{tpu_custom_call.1} parent=1 // pred_region
      %s77 = ssub.s32 16, 16
      %78 = vsyncadd [#allocation15], %s77
      %s80 = sshll.u32 [#allocation14], 4
      %s81 = int_to_ptr.vmem [resolvable:$true] %s80
      %83 = dma.hbm_to_vmem [thread:$0]  %s5, 16, %s81, [#allocation15]
    $region25: #{tpu_custom_call.1} parent=1 // pred_fallthru
      _
    // Predicated region
    $region26: #{tpu_custom_call.1} parent=1 // pred_check
      _
    $region27: #{tpu_custom_call.1} parent=1 // pred_check_branch
      %85 = sbr.rel (0) target = $region29
    $region28: #{tpu_custom_call.1} parent=1 // pred_region
      %86 = dma.done [#allocation6], 2048
    $region29: #{tpu_custom_call.1} parent=1 // pred_fallthru
      _
    // Predicated region
    $region30: #{tpu_custom_call.1} parent=1 // pred_check
      _
    $region31: #{tpu_custom_call.1} parent=1 // pred_check_branch
      %88 = sbr.rel (0) target = $region33
    $region32: #{tpu_custom_call.1} parent=1 // pred_region
      %89 = dma.done [#allocation9], 32768
    $region33: #{tpu_custom_call.1} parent=1 // pred_fallthru
      _
    // Predicated region
    $region34: #{tpu_custom_call.1} parent=1 // pred_check
      _
    $region35: #{tpu_custom_call.1} parent=1 // pred_check_branch
      %91 = sbr.rel (0) target = $region37
    $region36: #{tpu_custom_call.1} parent=1 // pred_region
      %92 = dma.done [#allocation9], 65536
    $region37: #{tpu_custom_call.1} parent=1 // pred_fallthru
      _
    // Predicated region
    $region38: #{tpu_custom_call.1} parent=1 // pred_check
      _
    $region39: #{tpu_custom_call.1} parent=1 // pred_check_branch
      %94 = sbr.rel (0) target = $region41
    $region40: #{tpu_custom_call.1} parent=1 // pred_region
      %95 = dma.done [#allocation12], 128
    $region41: #{tpu_custom_call.1} parent=1 // pred_fallthru
      _
    // Predicated region
    $region42: #{tpu_custom_call.1} parent=1 // pred_check
      _
    $region43: #{tpu_custom_call.1} parent=1 // pred_check_branch
      %97 = sbr.rel (0) target = $region45
    $region44: #{tpu_custom_call.1} parent=1 // pred_region
      %98 = dma.done [#allocation12], 4096
    $region45: #{tpu_custom_call.1} parent=1 // pred_fallthru
      _
    // Predicated region
    $region46: #{tpu_custom_call.1} parent=1 // pred_check
      _
    $region47: #{tpu_custom_call.1} parent=1 // pred_check_branch
      %100 = sbr.rel (0) target = $region49
    $region48: #{tpu_custom_call.1} parent=1 // pred_region
      %101 = dma.done [#allocation15], 16
    $region49: #{tpu_custom_call.1} parent=1 // pred_fallthru
      _
    %102 = vst [vmem:[#allocation2] sm:$0xff] 0.0
    %103 = vst [vmem:[#allocation3] sm:$0xf] 0.0
    %104 = vst [vmem:[#allocation4] sm:$0xf] 0.0
    loop: start=0, step=1, limit=8
    $region50: #{tpu_custom_call.1} parent=1 // loop_pre_header
      _
    $region51: #{tpu_custom_call.1} parent=1 // loop_header
      %s106 = sphi 0, %s110
      %p107 = scmp.ge.s32.totalorder %s106, 8
    $region52: #{tpu_custom_call.1} parent=1 // loop_header_branch
      %109 = sbr.rel (%p107) target = $region56
    $region53: #{tpu_custom_call.1} parent=1 // loop_body
      %s111 = smul.u32 %s106, 8
      %s112 = smul.addr %s111, 2
      %s113 = scalar_lea.vmem [#allocation5], %s112
      %v114 = vld [vmem:[%s113] sm:$0xff]
      %v115 = vld [vmem:[%s113 + $0x8] sm:$0xff]
      %v116 = vld [vmem:[#allocation2] sm:$0xf]
      %v117 = vld [vmem:[#allocation8] sm:$0xff]
      %v118 = vld [vmem:[#allocation8 + $0x8] sm:$0xff]
      %v119 = vld [vmem:[#allocation8 + $0x10] sm:$0xff]
      %v120 = vld [vmem:[#allocation8 + $0x18] sm:$0xff]
      %v121 = vld [vmem:[#allocation8 + $0x20] sm:$0xff]
      %v122 = vld [vmem:[#allocation8 + $0x28] sm:$0xff]
      %v123 = vld [vmem:[#allocation8 + $0x30] sm:$0xff]
      %v124 = vld [vmem:[#allocation8 + $0x38] sm:$0xff]
      %v125 = vld [vmem:[#allocation8 + $0x40] sm:$0xff]
      %v126 = vld [vmem:[#allocation8 + $0x48] sm:$0xff]
      %v127 = vld [vmem:[#allocation8 + $0x50] sm:$0xff]
      %v128 = vld [vmem:[#allocation8 + $0x58] sm:$0xff]
      %v129 = vld [vmem:[#allocation8 + $0x60] sm:$0xff]
      %v130 = vld [vmem:[#allocation8 + $0x68] sm:$0xff]
      %v131 = vld [vmem:[#allocation8 + $0x70] sm:$0xff]
      %v132 = vld [vmem:[#allocation8 + $0x78] sm:$0xff]
      %v133 = vld [vmem:[#allocation8 + $0x80] sm:$0xff]
      %v134 = vld [vmem:[#allocation8 + $0x88] sm:$0xff]
      %v135 = vld [vmem:[#allocation8 + $0x90] sm:$0xff]
      %v136 = vld [vmem:[#allocation8 + $0x98] sm:$0xff]
      %v137 = vld [vmem:[#allocation8 + $0xa0] sm:$0xff]
      %v138 = vld [vmem:[#allocation8 + $0xa8] sm:$0xff]
      %v139 = vld [vmem:[#allocation8 + $0xb0] sm:$0xff]
      %v140 = vld [vmem:[#allocation8 + $0xb8] sm:$0xff]
      %v141 = vld [vmem:[#allocation8 + $0xc0] sm:$0xff]
      %v142 = vld [vmem:[#allocation8 + $0xc8] sm:$0xff]
      %v143 = vld [vmem:[#allocation8 + $0xd0] sm:$0xff]
      %v144 = vld [vmem:[#allocation8 + $0xd8] sm:$0xff]
      %v145 = vld [vmem:[#allocation8 + $0xe0] sm:$0xff]
      %v146 = vld [vmem:[#allocation8 + $0xe8] sm:$0xff]
      %v147 = vld [vmem:[#allocation8 + $0xf0] sm:$0xff]
      %v148 = vld [vmem:[#allocation8 + $0xf8] sm:$0xff]
      %v149 = vld [vmem:[#allocation8 + $0x100] sm:$0xff]
      %v150 = vld [vmem:[#allocation8 + $0x108] sm:$0xff]
      %v151 = vld [vmem:[#allocation8 + $0x110] sm:$0xff]
      %v152 = vld [vmem:[#allocation8 + $0x118] sm:$0xff]
      %v153 = vld [vmem:[#allocation8 + $0x120] sm:$0xff]
      %v154 = vld [vmem:[#allocation8 + $0x128] sm:$0xff]
      %v155 = vld [vmem:[#allocation8 + $0x130] sm:$0xff]
      %v156 = vld [vmem:[#allocation8 + $0x138] sm:$0xff]
      %v157 = vld [vmem:[#allocation8 + $0x140] sm:$0xff]
      %v158 = vld [vmem:[#allocation8 + $0x148] sm:$0xff]
      %v159 = vld [vmem:[#allocation8 + $0x150] sm:$0xff]
      %v160 = vld [vmem:[#allocation8 + $0x158] sm:$0xff]
      %v161 = vld [vmem:[#allocation8 + $0x160] sm:$0xff]
      %v162 = vld [vmem:[#allocation8 + $0x168] sm:$0xff]
      %v163 = vld [vmem:[#allocation8 + $0x170] sm:$0xff]
      %v164 = vld [vmem:[#allocation8 + $0x178] sm:$0xff]
      %v165 = vld [vmem:[#allocation8 + $0x180] sm:$0xff]
      %v166 = vld [vmem:[#allocation8 + $0x188] sm:$0xff]
      %v167 = vld [vmem:[#allocation8 + $0x190] sm:$0xff]
      %v168 = vld [vmem:[#allocation8 + $0x198] sm:$0xff]
      %v169 = vld [vmem:[#allocation8 + $0x1a0] sm:$0xff]
      %v170 = vld [vmem:[#allocation8 + $0x1a8] sm:$0xff]
      %v171 = vld [vmem:[#allocation8 + $0x1b0] sm:$0xff]
      %v172 = vld [vmem:[#allocation8 + $0x1b8] sm:$0xff]
      %v173 = vld [vmem:[#allocation8 + $0x1c0] sm:$0xff]
      %v174 = vld [vmem:[#allocation8 + $0x1c8] sm:$0xff]
      %v175 = vld [vmem:[#allocation8 + $0x1d0] sm:$0xff]
      %v176 = vld [vmem:[#allocation8 + $0x1d8] sm:$0xff]
      %v177 = vld [vmem:[#allocation8 + $0x1e0] sm:$0xff]
      %v178 = vld [vmem:[#allocation8 + $0x1e8] sm:$0xff]
      %v179 = vld [vmem:[#allocation8 + $0x1f0] sm:$0xff]
      %v180 = vld [vmem:[#allocation8 + $0x1f8] sm:$0xff]
      %v181 = vld [vmem:[#allocation8 + $0x200] sm:$0xff]
      %v182 = vld [vmem:[#allocation8 + $0x208] sm:$0xff]
      %v183 = vld [vmem:[#allocation8 + $0x210] sm:$0xff]
      %v184 = vld [vmem:[#allocation8 + $0x218] sm:$0xff]
      %v185 = vld [vmem:[#allocation8 + $0x220] sm:$0xff]
      %v186 = vld [vmem:[#allocation8 + $0x228] sm:$0xff]
      %v187 = vld [vmem:[#allocation8 + $0x230] sm:$0xff]
      %v188 = vld [vmem:[#allocation8 + $0x238] sm:$0xff]
      %v189 = vld [vmem:[#allocation8 + $0x240] sm:$0xff]
      %v190 = vld [vmem:[#allocation8 + $0x248] sm:$0xff]
      %v191 = vld [vmem:[#allocation8 + $0x250] sm:$0xff]
      %v192 = vld [vmem:[#allocation8 + $0x258] sm:$0xff]
      %v193 = vld [vmem:[#allocation8 + $0x260] sm:$0xff]
      %v194 = vld [vmem:[#allocation8 + $0x268] sm:$0xff]
      %v195 = vld [vmem:[#allocation8 + $0x270] sm:$0xff]
      %v196 = vld [vmem:[#allocation8 + $0x278] sm:$0xff]
      %v197 = vld [vmem:[#allocation8 + $0x280] sm:$0xff]
      %v198 = vld [vmem:[#allocation8 + $0x288] sm:$0xff]
      %v199 = vld [vmem:[#allocation8 + $0x290] sm:$0xff]
      %v200 = vld [vmem:[#allocation8 + $0x298] sm:$0xff]
      %v201 = vld [vmem:[#allocation8 + $0x2a0] sm:$0xff]
      %v202 = vld [vmem:[#allocation8 + $0x2a8] sm:$0xff]
      %v203 = vld [vmem:[#allocation8 + $0x2b0] sm:$0xff]
      %v204 = vld [vmem:[#allocation8 + $0x2b8] sm:$0xff]
      %v205 = vld [vmem:[#allocation8 + $0x2c0] sm:$0xff]
      %v206 = vld [vmem:[#allocation8 + $0x2c8] sm:$0xff]
      %v207 = vld [vmem:[#allocation8 + $0x2d0] sm:$0xff]
      %v208 = vld [vmem:[#allocation8 + $0x2d8] sm:$0xff]
      %v209 = vld [vmem:[#allocation8 + $0x2e0] sm:$0xff]
      %v210 = vld [vmem:[#allocation8 + $0x2e8] sm:$0xff]
      %v211 = vld [vmem:[#allocation8 + $0x2f0] sm:$0xff]
      %v212 = vld [vmem:[#allocation8 + $0x2f8] sm:$0xff]
      %v213 = vld [vmem:[#allocation8 + $0x300] sm:$0xff]
      %v214 = vld [vmem:[#allocation8 + $0x308] sm:$0xff]
      %v215 = vld [vmem:[#allocation8 + $0x310] sm:$0xff]
      %v216 = vld [vmem:[#allocation8 + $0x318] sm:$0xff]
      %v217 = vld [vmem:[#allocation8 + $0x320] sm:$0xff]
      %v218 = vld [vmem:[#allocation8 + $0x328] sm:$0xff]
      %v219 = vld [vmem:[#allocation8 + $0x330] sm:$0xff]
      %v220 = vld [vmem:[#allocation8 + $0x338] sm:$0xff]
      %v221 = vld [vmem:[#allocation8 + $0x340] sm:$0xff]
      %v222 = vld [vmem:[#allocation8 + $0x348] sm:$0xff]
      %v223 = vld [vmem:[#allocation8 + $0x350] sm:$0xff]
      %v224 = vld [vmem:[#allocation8 + $0x358] sm:$0xff]
      %v225 = vld [vmem:[#allocation8 + $0x360] sm:$0xff]
      %v226 = vld [vmem:[#allocation8 + $0x368] sm:$0xff]
      %v227 = vld [vmem:[#allocation8 + $0x370] sm:$0xff]
      %v228 = vld [vmem:[#allocation8 + $0x378] sm:$0xff]
      %v229 = vld [vmem:[#allocation8 + $0x380] sm:$0xff]
      %v230 = vld [vmem:[#allocation8 + $0x388] sm:$0xff]
      %v231 = vld [vmem:[#allocation8 + $0x390] sm:$0xff]
      %v232 = vld [vmem:[#allocation8 + $0x398] sm:$0xff]
      %v233 = vld [vmem:[#allocation8 + $0x3a0] sm:$0xff]
      %v234 = vld [vmem:[#allocation8 + $0x3a8] sm:$0xff]
      %v235 = vld [vmem:[#allocation8 + $0x3b0] sm:$0xff]
      %v236 = vld [vmem:[#allocation8 + $0x3b8] sm:$0xff]
      %v237 = vld [vmem:[#allocation8 + $0x3c0] sm:$0xff]
      %v238 = vld [vmem:[#allocation8 + $0x3c8] sm:$0xff]
      %v239 = vld [vmem:[#allocation8 + $0x3d0] sm:$0xff]
      %v240 = vld [vmem:[#allocation8 + $0x3d8] sm:$0xff]
      %v241 = vld [vmem:[#allocation8 + $0x3e0] sm:$0xff]
      %v242 = vld [vmem:[#allocation8 + $0x3e8] sm:$0xff]
      %v243 = vld [vmem:[#allocation8 + $0x3f0] sm:$0xff]
      %v244 = vld [vmem:[#allocation8 + $0x3f8] sm:$0xff]
      %v245 = vld [vmem:[#allocation8 + $0x400] sm:$0xff]
      %v246 = vld [vmem:[#allocation8 + $0x408] sm:$0xff]
      %v247 = vld [vmem:[#allocation8 + $0x410] sm:$0xff]
      %v248 = vld [vmem:[#allocation8 + $0x418] sm:$0xff]
      %v249 = vld [vmem:[#allocation8 + $0x420] sm:$0xff]
      %v250 = vld [vmem:[#allocation8 + $0x428] sm:$0xff]
      %v251 = vld [vmem:[#allocation8 + $0x430] sm:$0xff]
      %v252 = vld [vmem:[#allocation8 + $0x438] sm:$0xff]
      %v253 = vld [vmem:[#allocation8 + $0x440] sm:$0xff]
      %v254 = vld [vmem:[#allocation8 + $0x448] sm:$0xff]
      %v255 = vld [vmem:[#allocation8 + $0x450] sm:$0xff]
      %v256 = vld [vmem:[#allocation8 + $0x458] sm:$0xff]
      %v257 = vld [vmem:[#allocation8 + $0x460] sm:$0xff]
      %v258 = vld [vmem:[#allocation8 + $0x468] sm:$0xff]
      %v259 = vld [vmem:[#allocation8 + $0x470] sm:$0xff]
      %v260 = vld [vmem:[#allocation8 + $0x478] sm:$0xff]
      %v261 = vld [vmem:[#allocation8 + $0x480] sm:$0xff]
      %v262 = vld [vmem:[#allocation8 + $0x488] sm:$0xff]
      %v263 = vld [vmem:[#allocation8 + $0x490] sm:$0xff]
      %v264 = vld [vmem:[#allocation8 + $0x498] sm:$0xff]
      %v265 = vld [vmem:[#allocation8 + $0x4a0] sm:$0xff]
      %v266 = vld [vmem:[#allocation8 + $0x4a8] sm:$0xff]
      %v267 = vld [vmem:[#allocation8 + $0x4b0] sm:$0xff]
      %v268 = vld [vmem:[#allocation8 + $0x4b8] sm:$0xff]
      %v269 = vld [vmem:[#allocation8 + $0x4c0] sm:$0xff]
      %v270 = vld [vmem:[#allocation8 + $0x4c8] sm:$0xff]
      %v271 = vld [vmem:[#allocation8 + $0x4d0] sm:$0xff]
      %v272 = vld [vmem:[#allocation8 + $0x4d8] sm:$0xff]
      %v273 = vld [vmem:[#allocation8 + $0x4e0] sm:$0xff]
      %v274 = vld [vmem:[#allocation8 + $0x4e8] sm:$0xff]
      %v275 = vld [vmem:[#allocation8 + $0x4f0] sm:$0xff]
      %v276 = vld [vmem:[#allocation8 + $0x4f8] sm:$0xff]
      %v277 = vld [vmem:[#allocation8 + $0x500] sm:$0xff]
      %v278 = vld [vmem:[#allocation8 + $0x508] sm:$0xff]
      %v279 = vld [vmem:[#allocation8 + $0x510] sm:$0xff]
      %v280 = vld [vmem:[#allocation8 + $0x518] sm:$0xff]
      %v281 = vld [vmem:[#allocation8 + $0x520] sm:$0xff]
      %v282 = vld [vmem:[#allocation8 + $0x528] sm:$0xff]
      %v283 = vld [vmem:[#allocation8 + $0x530] sm:$0xff]
      %v284 = vld [vmem:[#allocation8 + $0x538] sm:$0xff]
      %v285 = vld [vmem:[#allocation8 + $0x540] sm:$0xff]
      %v286 = vld [vmem:[#allocation8 + $0x548] sm:$0xff]
      %v287 = vld [vmem:[#allocation8 + $0x550] sm:$0xff]
      %v288 = vld [vmem:[#allocation8 + $0x558] sm:$0xff]
      %v289 = vld [vmem:[#allocation8 + $0x560] sm:$0xff]
      %v290 = vld [vmem:[#allocation8 + $0x568] sm:$0xff]
      %v291 = vld [vmem:[#allocation8 + $0x570] sm:$0xff]
      %v292 = vld [vmem:[#allocation8 + $0x578] sm:$0xff]
      %v293 = vld [vmem:[#allocation8 + $0x580] sm:$0xff]
      %v294 = vld [vmem:[#allocation8 + $0x588] sm:$0xff]
      %v295 = vld [vmem:[#allocation8 + $0x590] sm:$0xff]
      %v296 = vld [vmem:[#allocation8 + $0x598] sm:$0xff]
      %v297 = vld [vmem:[#allocation8 + $0x5a0] sm:$0xff]
      %v298 = vld [vmem:[#allocation8 + $0x5a8] sm:$0xff]
      %v299 = vld [vmem:[#allocation8 + $0x5b0] sm:$0xff]
      %v300 = vld [vmem:[#allocation8 + $0x5b8] sm:$0xff]
      %v301 = vld [vmem:[#allocation8 + $0x5c0] sm:$0xff]
      %v302 = vld [vmem:[#allocation8 + $0x5c8] sm:$0xff]
      %v303 = vld [vmem:[#allocation8 + $0x5d0] sm:$0xff]
      %v304 = vld [vmem:[#allocation8 + $0x5d8] sm:$0xff]
      %v305 = vld [vmem:[#allocation8 + $0x5e0] sm:$0xff]
      %v306 = vld [vmem:[#allocation8 + $0x5e8] sm:$0xff]
      %v307 = vld [vmem:[#allocation8 + $0x5f0] sm:$0xff]
      %v308 = vld [vmem:[#allocation8 + $0x5f8] sm:$0xff]
      %v309 = vld [vmem:[#allocation8 + $0x600] sm:$0xff]
      %v310 = vld [vmem:[#allocation8 + $0x608] sm:$0xff]
      %v311 = vld [vmem:[#allocation8 + $0x610] sm:$0xff]
      %v312 = vld [vmem:[#allocation8 + $0x618] sm:$0xff]
      %v313 = vld [vmem:[#allocation8 + $0x620] sm:$0xff]
      %v314 = vld [vmem:[#allocation8 + $0x628] sm:$0xff]
      %v315 = vld [vmem:[#allocation8 + $0x630] sm:$0xff]
      %v316 = vld [vmem:[#allocation8 + $0x638] sm:$0xff]
      %v317 = vld [vmem:[#allocation8 + $0x640] sm:$0xff]
      %v318 = vld [vmem:[#allocation8 + $0x648] sm:$0xff]
      %v319 = vld [vmem:[#allocation8 + $0x650] sm:$0xff]
      %v320 = vld [vmem:[#allocation8 + $0x658] sm:$0xff]
      %v321 = vld [vmem:[#allocation8 + $0x660] sm:$0xff]
      %v322 = vld [vmem:[#allocation8 + $0x668] sm:$0xff]
      %v323 = vld [vmem:[#allocation8 + $0x670] sm:$0xff]
      %v324 = vld [vmem:[#allocation8 + $0x678] sm:$0xff]
      %v325 = vld [vmem:[#allocation8 + $0x680] sm:$0xff]
      %v326 = vld [vmem:[#allocation8 + $0x688] sm:$0xff]
      %v327 = vld [vmem:[#allocation8 + $0x690] sm:$0xff]
      %v328 = vld [vmem:[#allocation8 + $0x698] sm:$0xff]
      %v329 = vld [vmem:[#allocation8 + $0x6a0] sm:$0xff]
      %v330 = vld [vmem:[#allocation8 + $0x6a8] sm:$0xff]
      %v331 = vld [vmem:[#allocation8 + $0x6b0] sm:$0xff]
      %v332 = vld [vmem:[#allocation8 + $0x6b8] sm:$0xff]
      %v333 = vld [vmem:[#allocation8 + $0x6c0] sm:$0xff]
      %v334 = vld [vmem:[#allocation8 + $0x6c8] sm:$0xff]
      %v335 = vld [vmem:[#allocation8 + $0x6d0] sm:$0xff]
      %v336 = vld [vmem:[#allocation8 + $0x6d8] sm:$0xff]
      %v337 = vld [vmem:[#allocation8 + $0x6e0] sm:$0xff]
      %v338 = vld [vmem:[#allocation8 + $0x6e8] sm:$0xff]
      %v339 = vld [vmem:[#allocation8 + $0x6f0] sm:$0xff]
      %v340 = vld [vmem:[#allocation8 + $0x6f8] sm:$0xff]
      %v341 = vld [vmem:[#allocation8 + $0x700] sm:$0xff]
      %v342 = vld [vmem:[#allocation8 + $0x708] sm:$0xff]
      %v343 = vld [vmem:[#allocation8 + $0x710] sm:$0xff]
      %v344 = vld [vmem:[#allocation8 + $0x718] sm:$0xff]
      %v345 = vld [vmem:[#allocation8 + $0x720] sm:$0xff]
      %v346 = vld [vmem:[#allocation8 + $0x728] sm:$0xff]
      %v347 = vld [vmem:[#allocation8 + $0x730] sm:$0xff]
      %v348 = vld [vmem:[#allocation8 + $0x738] sm:$0xff]
      %v349 = vld [vmem:[#allocation8 + $0x740] sm:$0xff]
      %v350 = vld [vmem:[#allocation8 + $0x748] sm:$0xff]
      %v351 = vld [vmem:[#allocation8 + $0x750] sm:$0xff]
      %v352 = vld [vmem:[#allocation8 + $0x758] sm:$0xff]
      %v353 = vld [vmem:[#allocation8 + $0x760] sm:$0xff]
      %v354 = vld [vmem:[#allocation8 + $0x768] sm:$0xff]
      %v355 = vld [vmem:[#allocation8 + $0x770] sm:$0xff]
      %v356 = vld [vmem:[#allocation8 + $0x778] sm:$0xff]
      %v357 = vld [vmem:[#allocation8 + $0x780] sm:$0xff]
      %v358 = vld [vmem:[#allocation8 + $0x788] sm:$0xff]
      %v359 = vld [vmem:[#allocation8 + $0x790] sm:$0xff]
      %v360 = vld [vmem:[#allocation8 + $0x798] sm:$0xff]
      %v361 = vld [vmem:[#allocation8 + $0x7a0] sm:$0xff]
      %v362 = vld [vmem:[#allocation8 + $0x7a8] sm:$0xff]
      %v363 = vld [vmem:[#allocation8 + $0x7b0] sm:$0xff]
      %v364 = vld [vmem:[#allocation8 + $0x7b8] sm:$0xff]
      %v365 = vld [vmem:[#allocation8 + $0x7c0] sm:$0xff]
      %v366 = vld [vmem:[#allocation8 + $0x7c8] sm:$0xff]
      %v367 = vld [vmem:[#allocation8 + $0x7d0] sm:$0xff]
      %v368 = vld [vmem:[#allocation8 + $0x7d8] sm:$0xff]
      %v369 = vld [vmem:[#allocation8 + $0x7e0] sm:$0xff]
      %v370 = vld [vmem:[#allocation8 + $0x7e8] sm:$0xff]
      %v371 = vld [vmem:[#allocation8 + $0x7f0] sm:$0xff]
      %v372 = vld [vmem:[#allocation8 + $0x7f8] sm:$0xff]
      %v375 = vunpack.c.l.s4 1983009808
      %v376 = vunpack.c.0.s8 %v375
      %v377 = vlaneseq
      %v378 = vshrl.u32 %v377, 7
      %v379 = vsub.s32 %v376, %v378
      %v380 = vrot.slane %v116, %v379
      %v381 = vcombine.high %v380, %v380
      %384 = vmatprep.subr.mxu0 %v118
      %385 = vmatpush1.msra.mxu0 %v117
      %386 = vmatprep.subr.mxu0 %v126
      %387 = vmatpush1.msra.mxu0 %v125
      %388 = vmatprep.subr.mxu0 %v134
      %389 = vmatpush1.msra.mxu0 %v133
      %390 = vmatprep.subr.mxu0 %v142
      %391 = vmatpush1.msra.mxu0 %v141
      %392 = vmatprep.subr.mxu0 %v150
      %393 = vmatpush1.msra.mxu0 %v149
      %394 = vmatprep.subr.mxu0 %v158
      %395 = vmatpush1.msra.mxu0 %v157
      %396 = vmatprep.subr.mxu0 %v166
      %397 = vmatpush1.msra.mxu0 %v165
      %398 = vmatprep.subr.mxu0 %v174
      %399 = vmatpush1.msra.mxu0 %v173
      %400 = vmatprep.subr.mxu0 %v182
      %401 = vmatpush1.msra.mxu0 %v181
      %402 = vmatprep.subr.mxu0 %v190
      %403 = vmatpush1.msra.mxu0 %v189
      %404 = vmatprep.subr.mxu0 %v198
      %405 = vmatpush1.msra.mxu0 %v197
      %406 = vmatprep.subr.mxu0 %v206
      %407 = vmatpush1.msra.mxu0 %v205
      %408 = vmatprep.subr.mxu0 %v214
      %409 = vmatpush1.msra.mxu0 %v213
      %410 = vmatprep.subr.mxu0 %v222
      %411 = vmatpush1.msra.mxu0 %v221
      %412 = vmatprep.subr.mxu0 %v230
      %413 = vmatpush1.msra.mxu0 %v229
      %414 = vmatprep.subr.mxu0 %v238
      %415 = vmatpush1.msra.mxu0 %v237
      %416 = vmatprep.subr.mxu0 %v246
      %417 = vmatpush1.msra.mxu0 %v245
      %418 = vmatprep.subr.mxu0 %v254
      %419 = vmatpush1.msra.mxu0 %v253
      %420 = vmatprep.subr.mxu0 %v262
      %421 = vmatpush1.msra.mxu0 %v261
      %422 = vmatprep.subr.mxu0 %v270
      %423 = vmatpush1.msra.mxu0 %v269
      %424 = vmatprep.subr.mxu0 %v278
      %425 = vmatpush1.msra.mxu0 %v277
      %426 = vmatprep.subr.mxu0 %v286
      %427 = vmatpush1.msra.mxu0 %v285
      %428 = vmatprep.subr.mxu0 %v294
      %429 = vmatpush1.msra.mxu0 %v293
      %430 = vmatprep.subr.mxu0 %v302
      %431 = vmatpush1.msra.mxu0 %v301
      %432 = vmatprep.subr.mxu0 %v310
      %433 = vmatpush1.msra.mxu0 %v309
      %434 = vmatprep.subr.mxu0 %v318
      %435 = vmatpush1.msra.mxu0 %v317
      %436 = vmatprep.subr.mxu0 %v326
      %437 = vmatpush1.msra.mxu0 %v325
      %438 = vmatprep.subr.mxu0 %v334
      %439 = vmatpush1.msra.mxu0 %v333
      %440 = vmatprep.subr.mxu0 %v342
      %441 = vmatpush1.msra.mxu0 %v341
      %442 = vmatprep.subr.mxu0 %v350
      %443 = vmatpush1.msra.mxu0 %v349
      %444 = vmatprep.subr.mxu0 %v358
      %445 = vmatpush1.msra.mxu0 %v357
      %446 = vmatprep.subr.mxu0 %v366
      %447 = vmatpush1.msra.mxu0 %v365
      %448 = vmatprep.mubr.f32.mxu0 %v381
      %449 = vmatmul.mubr.f32.gmra.mrb[0].mxu0 %v380
      %v450 = vpop.f32.mrb[0].mxu0
      %v451 = vadd.f32 0.0, %v450
      %v452 = vpop.f32.mrb[0].mxu0
      %v453 = vadd.f32 0.0, %v452
      %454 = vdwg.mxu0
      %455 = vmatprep.subr.mxu0 %v120
      %456 = vmatpush1.msra.mxu0 %v119
      %457 = vmatprep.subr.mxu0 %v128
      %458 = vmatpush1.msra.mxu0 %v127
      %459 = vmatprep.subr.mxu0 %v136
      %460 = vmatpush1.msra.mxu0 %v135
      %461 = vmatprep.subr.mxu0 %v144
      %462 = vmatpush1.msra.mxu0 %v143
      %463 = vmatprep.subr.mxu0 %v152
      %464 = vmatpush1.msra.mxu0 %v151
      %465 = vmatprep.subr.mxu0 %v160
      %466 = vmatpush1.msra.mxu0 %v159
      %467 = vmatprep.subr.mxu0 %v168
      %468 = vmatpush1.msra.mxu0 %v167
      %469 = vmatprep.subr.mxu0 %v176
      %470 = vmatpush1.msra.mxu0 %v175
      %471 = vmatprep.subr.mxu0 %v184
      %472 = vmatpush1.msra.mxu0 %v183
      %473 = vmatprep.subr.mxu0 %v192
      %474 = vmatpush1.msra.mxu0 %v191
      %475 = vmatprep.subr.mxu0 %v200
      %476 = vmatpush1.msra.mxu0 %v199
      %477 = vmatprep.subr.mxu0 %v208
      %478 = vmatpush1.msra.mxu0 %v207
      %479 = vmatprep.subr.mxu0 %v216
      %480 = vmatpush1.msra.mxu0 %v215
      %481 = vmatprep.subr.mxu0 %v224
      %482 = vmatpush1.msra.mxu0 %v223
      %483 = vmatprep.subr.mxu0 %v232
      %484 = vmatpush1.msra.mxu0 %v231
      %485 = vmatprep.subr.mxu0 %v240
      %486 = vmatpush1.msra.mxu0 %v239
      %487 = vmatprep.subr.mxu0 %v248
      %488 = vmatpush1.msra.mxu0 %v247
      %489 = vmatprep.subr.mxu0 %v256
      %490 = vmatpush1.msra.mxu0 %v255
      %491 = vmatprep.subr.mxu0 %v264
      %492 = vmatpush1.msra.mxu0 %v263
      %493 = vmatprep.subr.mxu0 %v272
      %494 = vmatpush1.msra.mxu0 %v271
      %495 = vmatprep.subr.mxu0 %v280
      %496 = vmatpush1.msra.mxu0 %v279
      %497 = vmatprep.subr.mxu0 %v288
      %498 = vmatpush1.msra.mxu0 %v287
      %499 = vmatprep.subr.mxu0 %v296
      %500 = vmatpush1.msra.mxu0 %v295
      %501 = vmatprep.subr.mxu0 %v304
      %502 = vmatpush1.msra.mxu0 %v303
      %503 = vmatprep.subr.mxu0 %v312
      %504 = vmatpush1.msra.mxu0 %v311
      %505 = vmatprep.subr.mxu0 %v320
      %506 = vmatpush1.msra.mxu0 %v319
      %507 = vmatprep.subr.mxu0 %v328
      %508 = vmatpush1.msra.mxu0 %v327
      %509 = vmatprep.subr.mxu0 %v336
      %510 = vmatpush1.msra.mxu0 %v335
      %511 = vmatprep.subr.mxu0 %v344
      %512 = vmatpush1.msra.mxu0 %v343
      %513 = vmatprep.subr.mxu0 %v352
      %514 = vmatpush1.msra.mxu0 %v351
      %515 = vmatprep.subr.mxu0 %v360
      %516 = vmatpush1.msra.mxu0 %v359
      %517 = vmatprep.subr.mxu0 %v368
      %518 = vmatpush1.msra.mxu0 %v367
      %519 = vmatprep.mubr.f32.mxu0 %v381
      %520 = vmatmul.mubr.f32.gmra.mrb[0].mxu0 %v380
      %v521 = vpop.f32.mrb[0].mxu0
      %v522 = vadd.f32 0.0, %v521
      %v523 = vpop.f32.mrb[0].mxu0
      %v524 = vadd.f32 0.0, %v523
      %525 = vdwg.mxu0
      %526 = vmatprep.subr.mxu0 %v122
      %527 = vmatpush1.msra.mxu0 %v121
      %528 = vmatprep.subr.mxu0 %v130
      %529 = vmatpush1.msra.mxu0 %v129
      %530 = vmatprep.subr.mxu0 %v138
      %531 = vmatpush1.msra.mxu0 %v137
      %532 = vmatprep.subr.mxu0 %v146
      %533 = vmatpush1.msra.mxu0 %v145
      %534 = vmatprep.subr.mxu0 %v154
      %535 = vmatpush1.msra.mxu0 %v153
      %536 = vmatprep.subr.mxu0 %v162
      %537 = vmatpush1.msra.mxu0 %v161
      %538 = vmatprep.subr.mxu0 %v170
      %539 = vmatpush1.msra.mxu0 %v169
      %540 = vmatprep.subr.mxu0 %v178
      %541 = vmatpush1.msra.mxu0 %v177
      %542 = vmatprep.subr.mxu0 %v186
      %543 = vmatpush1.msra.mxu0 %v185
      %544 = vmatprep.subr.mxu0 %v194
      %545 = vmatpush1.msra.mxu0 %v193
      %546 = vmatprep.subr.mxu0 %v202
      %547 = vmatpush1.msra.mxu0 %v201
      %548 = vmatprep.subr.mxu0 %v210
      %549 = vmatpush1.msra.mxu0 %v209
      %550 = vmatprep.subr.mxu0 %v218
      %551 = vmatpush1.msra.mxu0 %v217
      %552 = vmatprep.subr.mxu0 %v226
      %553 = vmatpush1.msra.mxu0 %v225
      %554 = vmatprep.subr.mxu0 %v234
      %555 = vmatpush1.msra.mxu0 %v233
      %556 = vmatprep.subr.mxu0 %v242
      %557 = vmatpush1.msra.mxu0 %v241
      %558 = vmatprep.subr.mxu0 %v250
      %559 = vmatpush1.msra.mxu0 %v249
      %560 = vmatprep.subr.mxu0 %v258
      %561 = vmatpush1.msra.mxu0 %v257
      %562 = vmatprep.subr.mxu0 %v266
      %563 = vmatpush1.msra.mxu0 %v265
      %564 = vmatprep.subr.mxu0 %v274
      %565 = vmatpush1.msra.mxu0 %v273
      %566 = vmatprep.subr.mxu0 %v282
      %567 = vmatpush1.msra.mxu0 %v281
      %568 = vmatprep.subr.mxu0 %v290
      %569 = vmatpush1.msra.mxu0 %v289
      %570 = vmatprep.subr.mxu0 %v298
      %571 = vmatpush1.msra.mxu0 %v297
      %572 = vmatprep.subr.mxu0 %v306
      %573 = vmatpush1.msra.mxu0 %v305
      %574 = vmatprep.subr.mxu0 %v314
      %575 = vmatpush1.msra.mxu0 %v313
      %576 = vmatprep.subr.mxu0 %v322
      %577 = vmatpush1.msra.mxu0 %v321
      %578 = vmatprep.subr.mxu0 %v330
      %579 = vmatpush1.msra.mxu0 %v329
      %580 = vmatprep.subr.mxu0 %v338
      %581 = vmatpush1.msra.mxu0 %v337
      %582 = vmatprep.subr.mxu0 %v346
      %583 = vmatpush1.msra.mxu0 %v345
      %584 = vmatprep.subr.mxu0 %v354
      %585 = vmatpush1.msra.mxu0 %v353
      %586 = vmatprep.subr.mxu0 %v362
      %587 = vmatpush1.msra.mxu0 %v361
      %588 = vmatprep.subr.mxu0 %v370
      %589 = vmatpush1.msra.mxu0 %v369
      %590 = vmatprep.mubr.f32.mxu0 %v381
      %591 = vmatmul.mubr.f32.gmra.mrb[0].mxu0 %v380
      %v592 = vpop.f32.mrb[0].mxu0
      %v593 = vadd.f32 0.0, %v592
      %v594 = vpop.f32.mrb[0].mxu0
      %v595 = vadd.f32 0.0, %v594
      %596 = vdwg.mxu0
      %597 = vmatprep.subr.mxu0 %v124
      %598 = vmatpush1.msra.mxu0 %v123
      %599 = vmatprep.subr.mxu0 %v132
      %600 = vmatpush1.msra.mxu0 %v131
      %601 = vmatprep.subr.mxu0 %v140
      %602 = vmatpush1.msra.mxu0 %v139
      %603 = vmatprep.subr.mxu0 %v148
      %604 = vmatpush1.msra.mxu0 %v147
      %605 = vmatprep.subr.mxu0 %v156
      %606 = vmatpush1.msra.mxu0 %v155
      %607 = vmatprep.subr.mxu0 %v164
      %608 = vmatpush1.msra.mxu0 %v163
      %609 = vmatprep.subr.mxu0 %v172
      %610 = vmatpush1.msra.mxu0 %v171
      %611 = vmatprep.subr.mxu0 %v180
      %612 = vmatpush1.msra.mxu0 %v179
      %613 = vmatprep.subr.mxu0 %v188
      %614 = vmatpush1.msra.mxu0 %v187
      %615 = vmatprep.subr.mxu0 %v196
      %616 = vmatpush1.msra.mxu0 %v195
      %617 = vmatprep.subr.mxu0 %v204
      %618 = vmatpush1.msra.mxu0 %v203
      %619 = vmatprep.subr.mxu0 %v212
      %620 = vmatpush1.msra.mxu0 %v211
      %621 = vmatprep.subr.mxu0 %v220
      %622 = vmatpush1.msra.mxu0 %v219
      %623 = vmatprep.subr.mxu0 %v228
      %624 = vmatpush1.msra.mxu0 %v227
      %625 = vmatprep.subr.mxu0 %v236
      %626 = vmatpush1.msra.mxu0 %v235
      %627 = vmatprep.subr.mxu0 %v244
      %628 = vmatpush1.msra.mxu0 %v243
      %629 = vmatprep.subr.mxu0 %v252
      %630 = vmatpush1.msra.mxu0 %v251
      %631 = vmatprep.subr.mxu0 %v260
      %632 = vmatpush1.msra.mxu0 %v259
      %633 = vmatprep.subr.mxu0 %v268
      %634 = vmatpush1.msra.mxu0 %v267
      %635 = vmatprep.subr.mxu0 %v276
      %636 = vmatpush1.msra.mxu0 %v275
      %637 = vmatprep.subr.mxu0 %v284
      %638 = vmatpush1.msra.mxu0 %v283
      %639 = vmatprep.subr.mxu0 %v292
      %640 = vmatpush1.msra.mxu0 %v291
      %641 = vmatprep.subr.mxu0 %v300
      %642 = vmatpush1.msra.mxu0 %v299
      %643 = vmatprep.subr.mxu0 %v308
      %644 = vmatpush1.msra.mxu0 %v307
      %645 = vmatprep.subr.mxu0 %v316
      %646 = vmatpush1.msra.mxu0 %v315
      %647 = vmatprep.subr.mxu0 %v324
      %648 = vmatpush1.msra.mxu0 %v323
      %649 = vmatprep.subr.mxu0 %v332
      %650 = vmatpush1.msra.mxu0 %v331
      %651 = vmatprep.subr.mxu0 %v340
      %652 = vmatpush1.msra.mxu0 %v339
      %653 = vmatprep.subr.mxu0 %v348
      %654 = vmatpush1.msra.mxu0 %v347
      %655 = vmatprep.subr.mxu0 %v356
      %656 = vmatpush1.msra.mxu0 %v355
      %657 = vmatprep.subr.mxu0 %v364
      %658 = vmatpush1.msra.mxu0 %v363
      %659 = vmatprep.subr.mxu0 %v372
      %660 = vmatpush1.msra.mxu0 %v371
      %661 = vmatprep.mubr.f32.mxu0 %v381
      %662 = vmatmul.mubr.f32.gmra.mrb[0].mxu0 %v380
      %v663 = vpop.f32.mrb[0].mxu0
      %v664 = vadd.f32 0.0, %v663
      %v665 = vpop.f32.mrb[0].mxu0
      %v666 = vadd.f32 0.0, %v665
      %667 = vdwg.mxu0
      %v676 = vcombine.low %v451, %v453
      %v677 = vcombine.low %v522, %v524
      %v679 = vunpack.c.l.s4 1983009808
      %v680 = vunpack.c.0.s8 %v679
      %v681 = vlaneseq
      %v682 = vshrl.u32 %v681, 7
      %v683 = vsub.s32 %v680, %v682
      %v684 = vrot.slane %v676, %v683
      %v686 = vunpack.c.l.s4 1983009808
      %v687 = vunpack.c.0.s8 %v686
      %v688 = vlaneseq
      %v689 = vshrl.u32 %v688, 7
      %v690 = vsub.s32 %v687, %v689
      %v691 = vrot.slane %v677, %v690
      %v692 = vcombine.low %v684, %v691
      %v693 = vcombine.low %v593, %v595
      %v694 = vcombine.low %v664, %v666
      %v696 = vunpack.c.l.s4 1983009808
      %v697 = vunpack.c.0.s8 %v696
      %v698 = vlaneseq
      %v699 = vshrl.u32 %v698, 7
      %v700 = vsub.s32 %v697, %v699
      %v701 = vrot.slane %v693, %v700
      %v703 = vunpack.c.l.s4 1983009808
      %v704 = vunpack.c.0.s8 %v703
      %v705 = vlaneseq
      %v706 = vshrl.u32 %v705, 7
      %v707 = vsub.s32 %v704, %v706
      %v708 = vrot.slane %v694, %v707
      %v709 = vcombine.low %v701, %v708
      %v712 = vadd.f32 %v114, %v692
      %v713 = vadd.f32 %v115, %v709
      %v714 = vld [vmem:[#allocation3] sm:$0xf]
      %v715 = vxor.u32 %v712, 2147483648
      %v716 = vxor.u32 %v713, 2147483648
      %v717 = vmul.f32 %v715, 1.442695
      %v718 = vpow.pop %v717
      %v719 = vmul.f32 %v716, 1.442695
      %v720 = vpow.pop %v719
      %v721 = vadd.f32 %v718, 1.0
      %v722 = vadd.f32 %v720, 1.0
      %v723 = vrcp.pop %v721
      %v724 = vmul.f32 1.0, %v723
      %v725 = vrcp.pop %v722
      %v726 = vmul.f32 1.0, %v725
      %v728 = vrot.slane %v713, 4
      %v730 = vtanh.pop %v728
      %v732 = vrot.slane %v724, 4
      %v734 = vmul.f32 %v732, %v714
      %v735 = vmul.f32 %v724, %v730
      %v736 = vadd.f32 %v734, %v735
      %v737 = vtanh.pop %v736
      %v738 = vmul.f32 %v726, %v737
      %739 = vst [vmem:[#allocation2] sm:$0xf] %v738
      %740 = vst [vmem:[#allocation3] sm:$0xf] %v736
      %v741 = vld [vmem:[#allocation2] sm:$0xff]
      %v742 = vld [vmem:[#allocation10] sm:$0xff]
      %v743 = vld [vmem:[#allocation10 + $0x8] sm:$0xff]
      %v744 = vld [vmem:[#allocation10 + $0x10] sm:$0xff]
      %v745 = vld [vmem:[#allocation10 + $0x18] sm:$0xff]
      %v746 = vld [vmem:[#allocation10 + $0x20] sm:$0xff]
      %v747 = vld [vmem:[#allocation10 + $0x28] sm:$0xff]
      %v748 = vld [vmem:[#allocation10 + $0x30] sm:$0xff]
      %v749 = vld [vmem:[#allocation10 + $0x38] sm:$0xff]
      %v750 = vld [vmem:[#allocation10 + $0x40] sm:$0xff]
      %v751 = vld [vmem:[#allocation10 + $0x48] sm:$0xff]
      %v752 = vld [vmem:[#allocation10 + $0x50] sm:$0xff]
      %v753 = vld [vmem:[#allocation10 + $0x58] sm:$0xff]
      %v754 = vld [vmem:[#allocation10 + $0x60] sm:$0xff]
      %v755 = vld [vmem:[#allocation10 + $0x68] sm:$0xff]
      %v756 = vld [vmem:[#allocation10 + $0x70] sm:$0xff]
      %v757 = vld [vmem:[#allocation10 + $0x78] sm:$0xff]
      %v758 = vld [vmem:[#allocation10 + $0x80] sm:$0xff]
      %v759 = vld [vmem:[#allocation10 + $0x88] sm:$0xff]
      %v760 = vld [vmem:[#allocation10 + $0x90] sm:$0xff]
      %v761 = vld [vmem:[#allocation10 + $0x98] sm:$0xff]
      %v762 = vld [vmem:[#allocation10 + $0xa0] sm:$0xff]
      %v763 = vld [vmem:[#allocation10 + $0xa8] sm:$0xff]
      %v764 = vld [vmem:[#allocation10 + $0xb0] sm:$0xff]
      %v765 = vld [vmem:[#allocation10 + $0xb8] sm:$0xff]
      %v766 = vld [vmem:[#allocation10 + $0xc0] sm:$0xff]
      %v767 = vld [vmem:[#allocation10 + $0xc8] sm:$0xff]
      %v768 = vld [vmem:[#allocation10 + $0xd0] sm:$0xff]
      %v769 = vld [vmem:[#allocation10 + $0xd8] sm:$0xff]
      %v770 = vld [vmem:[#allocation10 + $0xe0] sm:$0xff]
      %v771 = vld [vmem:[#allocation10 + $0xe8] sm:$0xff]
      %v772 = vld [vmem:[#allocation10 + $0xf0] sm:$0xff]
      %v773 = vld [vmem:[#allocation10 + $0xf8] sm:$0xff]
      %v774 = vld [vmem:[#allocation10 + $0x100] sm:$0xff]
      %v775 = vld [vmem:[#allocation10 + $0x108] sm:$0xff]
      %v776 = vld [vmem:[#allocation10 + $0x110] sm:$0xff]
      %v777 = vld [vmem:[#allocation10 + $0x118] sm:$0xff]
      %v778 = vld [vmem:[#allocation10 + $0x120] sm:$0xff]
      %v779 = vld [vmem:[#allocation10 + $0x128] sm:$0xff]
      %v780 = vld [vmem:[#allocation10 + $0x130] sm:$0xff]
      %v781 = vld [vmem:[#allocation10 + $0x138] sm:$0xff]
      %v782 = vld [vmem:[#allocation10 + $0x140] sm:$0xff]
      %v783 = vld [vmem:[#allocation10 + $0x148] sm:$0xff]
      %v784 = vld [vmem:[#allocation10 + $0x150] sm:$0xff]
      %v785 = vld [vmem:[#allocation10 + $0x158] sm:$0xff]
      %v786 = vld [vmem:[#allocation10 + $0x160] sm:$0xff]
      %v787 = vld [vmem:[#allocation10 + $0x168] sm:$0xff]
      %v788 = vld [vmem:[#allocation10 + $0x170] sm:$0xff]
      %v789 = vld [vmem:[#allocation10 + $0x178] sm:$0xff]
      %v790 = vld [vmem:[#allocation10 + $0x180] sm:$0xff]
      %v791 = vld [vmem:[#allocation10 + $0x188] sm:$0xff]
      %v792 = vld [vmem:[#allocation10 + $0x190] sm:$0xff]
      %v793 = vld [vmem:[#allocation10 + $0x198] sm:$0xff]
      %v794 = vld [vmem:[#allocation10 + $0x1a0] sm:$0xff]
      %v795 = vld [vmem:[#allocation10 + $0x1a8] sm:$0xff]
      %v796 = vld [vmem:[#allocation10 + $0x1b0] sm:$0xff]
      %v797 = vld [vmem:[#allocation10 + $0x1b8] sm:$0xff]
      %v798 = vld [vmem:[#allocation10 + $0x1c0] sm:$0xff]
      %v799 = vld [vmem:[#allocation10 + $0x1c8] sm:$0xff]
      %v800 = vld [vmem:[#allocation10 + $0x1d0] sm:$0xff]
      %v801 = vld [vmem:[#allocation10 + $0x1d8] sm:$0xff]
      %v802 = vld [vmem:[#allocation10 + $0x1e0] sm:$0xff]
      %v803 = vld [vmem:[#allocation10 + $0x1e8] sm:$0xff]
      %v804 = vld [vmem:[#allocation10 + $0x1f0] sm:$0xff]
      %v805 = vld [vmem:[#allocation10 + $0x1f8] sm:$0xff]
      %v806 = vld [vmem:[#allocation10 + $0x200] sm:$0xff]
      %v807 = vld [vmem:[#allocation10 + $0x208] sm:$0xff]
      %v808 = vld [vmem:[#allocation10 + $0x210] sm:$0xff]
      %v809 = vld [vmem:[#allocation10 + $0x218] sm:$0xff]
      %v810 = vld [vmem:[#allocation10 + $0x220] sm:$0xff]
      %v811 = vld [vmem:[#allocation10 + $0x228] sm:$0xff]
      %v812 = vld [vmem:[#allocation10 + $0x230] sm:$0xff]
      %v813 = vld [vmem:[#allocation10 + $0x238] sm:$0xff]
      %v814 = vld [vmem:[#allocation10 + $0x240] sm:$0xff]
      %v815 = vld [vmem:[#allocation10 + $0x248] sm:$0xff]
      %v816 = vld [vmem:[#allocation10 + $0x250] sm:$0xff]
      %v817 = vld [vmem:[#allocation10 + $0x258] sm:$0xff]
      %v818 = vld [vmem:[#allocation10 + $0x260] sm:$0xff]
      %v819 = vld [vmem:[#allocation10 + $0x268] sm:$0xff]
      %v820 = vld [vmem:[#allocation10 + $0x270] sm:$0xff]
      %v821 = vld [vmem:[#allocation10 + $0x278] sm:$0xff]
      %v822 = vld [vmem:[#allocation10 + $0x280] sm:$0xff]
      %v823 = vld [vmem:[#allocation10 + $0x288] sm:$0xff]
      %v824 = vld [vmem:[#allocation10 + $0x290] sm:$0xff]
      %v825 = vld [vmem:[#allocation10 + $0x298] sm:$0xff]
      %v826 = vld [vmem:[#allocation10 + $0x2a0] sm:$0xff]
      %v827 = vld [vmem:[#allocation10 + $0x2a8] sm:$0xff]
      %v828 = vld [vmem:[#allocation10 + $0x2b0] sm:$0xff]
      %v829 = vld [vmem:[#allocation10 + $0x2b8] sm:$0xff]
      %v830 = vld [vmem:[#allocation10 + $0x2c0] sm:$0xff]
      %v831 = vld [vmem:[#allocation10 + $0x2c8] sm:$0xff]
      %v832 = vld [vmem:[#allocation10 + $0x2d0] sm:$0xff]
      %v833 = vld [vmem:[#allocation10 + $0x2d8] sm:$0xff]
      %v834 = vld [vmem:[#allocation10 + $0x2e0] sm:$0xff]
      %v835 = vld [vmem:[#allocation10 + $0x2e8] sm:$0xff]
      %v836 = vld [vmem:[#allocation10 + $0x2f0] sm:$0xff]
      %v837 = vld [vmem:[#allocation10 + $0x2f8] sm:$0xff]
      %v838 = vld [vmem:[#allocation10 + $0x300] sm:$0xff]
      %v839 = vld [vmem:[#allocation10 + $0x308] sm:$0xff]
      %v840 = vld [vmem:[#allocation10 + $0x310] sm:$0xff]
      %v841 = vld [vmem:[#allocation10 + $0x318] sm:$0xff]
      %v842 = vld [vmem:[#allocation10 + $0x320] sm:$0xff]
      %v843 = vld [vmem:[#allocation10 + $0x328] sm:$0xff]
      %v844 = vld [vmem:[#allocation10 + $0x330] sm:$0xff]
      %v845 = vld [vmem:[#allocation10 + $0x338] sm:$0xff]
      %v846 = vld [vmem:[#allocation10 + $0x340] sm:$0xff]
      %v847 = vld [vmem:[#allocation10 + $0x348] sm:$0xff]
      %v848 = vld [vmem:[#allocation10 + $0x350] sm:$0xff]
      %v849 = vld [vmem:[#allocation10 + $0x358] sm:$0xff]
      %v850 = vld [vmem:[#allocation10 + $0x360] sm:$0xff]
      %v851 = vld [vmem:[#allocation10 + $0x368] sm:$0xff]
      %v852 = vld [vmem:[#allocation10 + $0x370] sm:$0xff]
      %v853 = vld [vmem:[#allocation10 + $0x378] sm:$0xff]
      %v854 = vld [vmem:[#allocation10 + $0x380] sm:$0xff]
      %v855 = vld [vmem:[#allocation10 + $0x388] sm:$0xff]
      %v856 = vld [vmem:[#allocation10 + $0x390] sm:$0xff]
      %v857 = vld [vmem:[#allocation10 + $0x398] sm:$0xff]
      %v858 = vld [vmem:[#allocation10 + $0x3a0] sm:$0xff]
      %v859 = vld [vmem:[#allocation10 + $0x3a8] sm:$0xff]
      %v860 = vld [vmem:[#allocation10 + $0x3b0] sm:$0xff]
      %v861 = vld [vmem:[#allocation10 + $0x3b8] sm:$0xff]
      %v862 = vld [vmem:[#allocation10 + $0x3c0] sm:$0xff]
      %v863 = vld [vmem:[#allocation10 + $0x3c8] sm:$0xff]
      %v864 = vld [vmem:[#allocation10 + $0x3d0] sm:$0xff]
      %v865 = vld [vmem:[#allocation10 + $0x3d8] sm:$0xff]
      %v866 = vld [vmem:[#allocation10 + $0x3e0] sm:$0xff]
      %v867 = vld [vmem:[#allocation10 + $0x3e8] sm:$0xff]
      %v868 = vld [vmem:[#allocation10 + $0x3f0] sm:$0xff]
      %v869 = vld [vmem:[#allocation10 + $0x3f8] sm:$0xff]
      %v870 = vld [vmem:[#allocation10 + $0x400] sm:$0xff]
      %v871 = vld [vmem:[#allocation10 + $0x408] sm:$0xff]
      %v872 = vld [vmem:[#allocation10 + $0x410] sm:$0xff]
      %v873 = vld [vmem:[#allocation10 + $0x418] sm:$0xff]
      %v874 = vld [vmem:[#allocation10 + $0x420] sm:$0xff]
      %v875 = vld [vmem:[#allocation10 + $0x428] sm:$0xff]
      %v876 = vld [vmem:[#allocation10 + $0x430] sm:$0xff]
      %v877 = vld [vmem:[#allocation10 + $0x438] sm:$0xff]
      %v878 = vld [vmem:[#allocation10 + $0x440] sm:$0xff]
      %v879 = vld [vmem:[#allocation10 + $0x448] sm:$0xff]
      %v880 = vld [vmem:[#allocation10 + $0x450] sm:$0xff]
      %v881 = vld [vmem:[#allocation10 + $0x458] sm:$0xff]
      %v882 = vld [vmem:[#allocation10 + $0x460] sm:$0xff]
      %v883 = vld [vmem:[#allocation10 + $0x468] sm:$0xff]
      %v884 = vld [vmem:[#allocation10 + $0x470] sm:$0xff]
      %v885 = vld [vmem:[#allocation10 + $0x478] sm:$0xff]
      %v886 = vld [vmem:[#allocation10 + $0x480] sm:$0xff]
      %v887 = vld [vmem:[#allocation10 + $0x488] sm:$0xff]
      %v888 = vld [vmem:[#allocation10 + $0x490] sm:$0xff]
      %v889 = vld [vmem:[#allocation10 + $0x498] sm:$0xff]
      %v890 = vld [vmem:[#allocation10 + $0x4a0] sm:$0xff]
      %v891 = vld [vmem:[#allocation10 + $0x4a8] sm:$0xff]
      %v892 = vld [vmem:[#allocation10 + $0x4b0] sm:$0xff]
      %v893 = vld [vmem:[#allocation10 + $0x4b8] sm:$0xff]
      %v894 = vld [vmem:[#allocation10 + $0x4c0] sm:$0xff]
      %v895 = vld [vmem:[#allocation10 + $0x4c8] sm:$0xff]
      %v896 = vld [vmem:[#allocation10 + $0x4d0] sm:$0xff]
      %v897 = vld [vmem:[#allocation10 + $0x4d8] sm:$0xff]
      %v898 = vld [vmem:[#allocation10 + $0x4e0] sm:$0xff]
      %v899 = vld [vmem:[#allocation10 + $0x4e8] sm:$0xff]
      %v900 = vld [vmem:[#allocation10 + $0x4f0] sm:$0xff]
      %v901 = vld [vmem:[#allocation10 + $0x4f8] sm:$0xff]
      %v902 = vld [vmem:[#allocation10 + $0x500] sm:$0xff]
      %v903 = vld [vmem:[#allocation10 + $0x508] sm:$0xff]
      %v904 = vld [vmem:[#allocation10 + $0x510] sm:$0xff]
      %v905 = vld [vmem:[#allocation10 + $0x518] sm:$0xff]
      %v906 = vld [vmem:[#allocation10 + $0x520] sm:$0xff]
      %v907 = vld [vmem:[#allocation10 + $0x528] sm:$0xff]
      %v908 = vld [vmem:[#allocation10 + $0x530] sm:$0xff]
      %v909 = vld [vmem:[#allocation10 + $0x538] sm:$0xff]
      %v910 = vld [vmem:[#allocation10 + $0x540] sm:$0xff]
      %v911 = vld [vmem:[#allocation10 + $0x548] sm:$0xff]
      %v912 = vld [vmem:[#allocation10 + $0x550] sm:$0xff]
      %v913 = vld [vmem:[#allocation10 + $0x558] sm:$0xff]
      %v914 = vld [vmem:[#allocation10 + $0x560] sm:$0xff]
      %v915 = vld [vmem:[#allocation10 + $0x568] sm:$0xff]
      %v916 = vld [vmem:[#allocation10 + $0x570] sm:$0xff]
      %v917 = vld [vmem:[#allocation10 + $0x578] sm:$0xff]
      %v918 = vld [vmem:[#allocation10 + $0x580] sm:$0xff]
      %v919 = vld [vmem:[#allocation10 + $0x588] sm:$0xff]
      %v920 = vld [vmem:[#allocation10 + $0x590] sm:$0xff]
      %v921 = vld [vmem:[#allocation10 + $0x598] sm:$0xff]
      %v922 = vld [vmem:[#allocation10 + $0x5a0] sm:$0xff]
      %v923 = vld [vmem:[#allocation10 + $0x5a8] sm:$0xff]
      %v924 = vld [vmem:[#allocation10 + $0x5b0] sm:$0xff]
      %v925 = vld [vmem:[#allocation10 + $0x5b8] sm:$0xff]
      %v926 = vld [vmem:[#allocation10 + $0x5c0] sm:$0xff]
      %v927 = vld [vmem:[#allocation10 + $0x5c8] sm:$0xff]
      %v928 = vld [vmem:[#allocation10 + $0x5d0] sm:$0xff]
      %v929 = vld [vmem:[#allocation10 + $0x5d8] sm:$0xff]
      %v930 = vld [vmem:[#allocation10 + $0x5e0] sm:$0xff]
      %v931 = vld [vmem:[#allocation10 + $0x5e8] sm:$0xff]
      %v932 = vld [vmem:[#allocation10 + $0x5f0] sm:$0xff]
      %v933 = vld [vmem:[#allocation10 + $0x5f8] sm:$0xff]
      %v934 = vld [vmem:[#allocation10 + $0x600] sm:$0xff]
      %v935 = vld [vmem:[#allocation10 + $0x608] sm:$0xff]
      %v936 = vld [vmem:[#allocation10 + $0x610] sm:$0xff]
      %v937 = vld [vmem:[#allocation10 + $0x618] sm:$0xff]
      %v938 = vld [vmem:[#allocation10 + $0x620] sm:$0xff]
      %v939 = vld [vmem:[#allocation10 + $0x628] sm:$0xff]
      %v940 = vld [vmem:[#allocation10 + $0x630] sm:$0xff]
      %v941 = vld [vmem:[#allocation10 + $0x638] sm:$0xff]
      %v942 = vld [vmem:[#allocation10 + $0x640] sm:$0xff]
      %v943 = vld [vmem:[#allocation10 + $0x648] sm:$0xff]
      %v944 = vld [vmem:[#allocation10 + $0x650] sm:$0xff]
      %v945 = vld [vmem:[#allocation10 + $0x658] sm:$0xff]
      %v946 = vld [vmem:[#allocation10 + $0x660] sm:$0xff]
      %v947 = vld [vmem:[#allocation10 + $0x668] sm:$0xff]
      %v948 = vld [vmem:[#allocation10 + $0x670] sm:$0xff]
      %v949 = vld [vmem:[#allocation10 + $0x678] sm:$0xff]
      %v950 = vld [vmem:[#allocation10 + $0x680] sm:$0xff]
      %v951 = vld [vmem:[#allocation10 + $0x688] sm:$0xff]
      %v952 = vld [vmem:[#allocation10 + $0x690] sm:$0xff]
      %v953 = vld [vmem:[#allocation10 + $0x698] sm:$0xff]
      %v954 = vld [vmem:[#allocation10 + $0x6a0] sm:$0xff]
      %v955 = vld [vmem:[#allocation10 + $0x6a8] sm:$0xff]
      %v956 = vld [vmem:[#allocation10 + $0x6b0] sm:$0xff]
      %v957 = vld [vmem:[#allocation10 + $0x6b8] sm:$0xff]
      %v958 = vld [vmem:[#allocation10 + $0x6c0] sm:$0xff]
      %v959 = vld [vmem:[#allocation10 + $0x6c8] sm:$0xff]
      %v960 = vld [vmem:[#allocation10 + $0x6d0] sm:$0xff]
      %v961 = vld [vmem:[#allocation10 + $0x6d8] sm:$0xff]
      %v962 = vld [vmem:[#allocation10 + $0x6e0] sm:$0xff]
      %v963 = vld [vmem:[#allocation10 + $0x6e8] sm:$0xff]
      %v964 = vld [vmem:[#allocation10 + $0x6f0] sm:$0xff]
      %v965 = vld [vmem:[#allocation10 + $0x6f8] sm:$0xff]
      %v966 = vld [vmem:[#allocation10 + $0x700] sm:$0xff]
      %v967 = vld [vmem:[#allocation10 + $0x708] sm:$0xff]
      %v968 = vld [vmem:[#allocation10 + $0x710] sm:$0xff]
      %v969 = vld [vmem:[#allocation10 + $0x718] sm:$0xff]
      %v970 = vld [vmem:[#allocation10 + $0x720] sm:$0xff]
      %v971 = vld [vmem:[#allocation10 + $0x728] sm:$0xff]
      %v972 = vld [vmem:[#allocation10 + $0x730] sm:$0xff]
      %v973 = vld [vmem:[#allocation10 + $0x738] sm:$0xff]
      %v974 = vld [vmem:[#allocation10 + $0x740] sm:$0xff]
      %v975 = vld [vmem:[#allocation10 + $0x748] sm:$0xff]
      %v976 = vld [vmem:[#allocation10 + $0x750] sm:$0xff]
      %v977 = vld [vmem:[#allocation10 + $0x758] sm:$0xff]
      %v978 = vld [vmem:[#allocation10 + $0x760] sm:$0xff]
      %v979 = vld [vmem:[#allocation10 + $0x768] sm:$0xff]
      %v980 = vld [vmem:[#allocation10 + $0x770] sm:$0xff]
      %v981 = vld [vmem:[#allocation10 + $0x778] sm:$0xff]
      %v982 = vld [vmem:[#allocation10 + $0x780] sm:$0xff]
      %v983 = vld [vmem:[#allocation10 + $0x788] sm:$0xff]
      %v984 = vld [vmem:[#allocation10 + $0x790] sm:$0xff]
      %v985 = vld [vmem:[#allocation10 + $0x798] sm:$0xff]
      %v986 = vld [vmem:[#allocation10 + $0x7a0] sm:$0xff]
      %v987 = vld [vmem:[#allocation10 + $0x7a8] sm:$0xff]
      %v988 = vld [vmem:[#allocation10 + $0x7b0] sm:$0xff]
      %v989 = vld [vmem:[#allocation10 + $0x7b8] sm:$0xff]
      %v990 = vld [vmem:[#allocation10 + $0x7c0] sm:$0xff]
      %v991 = vld [vmem:[#allocation10 + $0x7c8] sm:$0xff]
      %v992 = vld [vmem:[#allocation10 + $0x7d0] sm:$0xff]
      %v993 = vld [vmem:[#allocation10 + $0x7d8] sm:$0xff]
      %v994 = vld [vmem:[#allocation10 + $0x7e0] sm:$0xff]
      %v995 = vld [vmem:[#allocation10 + $0x7e8] sm:$0xff]
      %v996 = vld [vmem:[#allocation10 + $0x7f0] sm:$0xff]
      %v997 = vld [vmem:[#allocation10 + $0x7f8] sm:$0xff]
      %v998 = vld [vmem:[#allocation10 + $0x800] sm:$0xff]
      %v999 = vld [vmem:[#allocation10 + $0x808] sm:$0xff]
      %v1000 = vld [vmem:[#allocation10 + $0x810] sm:$0xff]
      %v1001 = vld [vmem:[#allocation10 + $0x818] sm:$0xff]
      %v1002 = vld [vmem:[#allocation10 + $0x820] sm:$0xff]
      %v1003 = vld [vmem:[#allocation10 + $0x828] sm:$0xff]
      %v1004 = vld [vmem:[#allocation10 + $0x830] sm:$0xff]
      %v1005 = vld [vmem:[#allocation10 + $0x838] sm:$0xff]
      %v1006 = vld [vmem:[#allocation10 + $0x840] sm:$0xff]
      %v1007 = vld [vmem:[#allocation10 + $0x848] sm:$0xff]
      %v1008 = vld [vmem:[#allocation10 + $0x850] sm:$0xff]
      %v1009 = vld [vmem:[#allocation10 + $0x858] sm:$0xff]
      %v1010 = vld [vmem:[#allocation10 + $0x860] sm:$0xff]
      %v1011 = vld [vmem:[#allocation10 + $0x868] sm:$0xff]
      %v1012 = vld [vmem:[#allocation10 + $0x870] sm:$0xff]
      %v1013 = vld [vmem:[#allocation10 + $0x878] sm:$0xff]
      %v1014 = vld [vmem:[#allocation10 + $0x880] sm:$0xff]
      %v1015 = vld [vmem:[#allocation10 + $0x888] sm:$0xff]
      %v1016 = vld [vmem:[#allocation10 + $0x890] sm:$0xff]
      %v1017 = vld [vmem:[#allocation10 + $0x898] sm:$0xff]
      %v1018 = vld [vmem:[#allocation10 + $0x8a0] sm:$0xff]
      %v1019 = vld [vmem:[#allocation10 + $0x8a8] sm:$0xff]
      %v1020 = vld [vmem:[#allocation10 + $0x8b0] sm:$0xff]
      %v1021 = vld [vmem:[#allocation10 + $0x8b8] sm:$0xff]
      %v1022 = vld [vmem:[#allocation10 + $0x8c0] sm:$0xff]
      %v1023 = vld [vmem:[#allocation10 + $0x8c8] sm:$0xff]
      %v1024 = vld [vmem:[#allocation10 + $0x8d0] sm:$0xff]
      %v1025 = vld [vmem:[#allocation10 + $0x8d8] sm:$0xff]
      %v1026 = vld [vmem:[#allocation10 + $0x8e0] sm:$0xff]
      %v1027 = vld [vmem:[#allocation10 + $0x8e8] sm:$0xff]
      %v1028 = vld [vmem:[#allocation10 + $0x8f0] sm:$0xff]
      %v1029 = vld [vmem:[#allocation10 + $0x8f8] sm:$0xff]
      %v1030 = vld [vmem:[#allocation10 + $0x900] sm:$0xff]
      %v1031 = vld [vmem:[#allocation10 + $0x908] sm:$0xff]
      %v1032 = vld [vmem:[#allocation10 + $0x910] sm:$0xff]
      %v1033 = vld [vmem:[#allocation10 + $0x918] sm:$0xff]
      %v1034 = vld [vmem:[#allocation10 + $0x920] sm:$0xff]
      %v1035 = vld [vmem:[#allocation10 + $0x928] sm:$0xff]
      %v1036 = vld [vmem:[#allocation10 + $0x930] sm:$0xff]
      %v1037 = vld [vmem:[#allocation10 + $0x938] sm:$0xff]
      %v1038 = vld [vmem:[#allocation10 + $0x940] sm:$0xff]
      %v1039 = vld [vmem:[#allocation10 + $0x948] sm:$0xff]
      %v1040 = vld [vmem:[#allocation10 + $0x950] sm:$0xff]
      %v1041 = vld [vmem:[#allocation10 + $0x958] sm:$0xff]
      %v1042 = vld [vmem:[#allocation10 + $0x960] sm:$0xff]
      %v1043 = vld [vmem:[#allocation10 + $0x968] sm:$0xff]
      %v1044 = vld [vmem:[#allocation10 + $0x970] sm:$0xff]
      %v1045 = vld [vmem:[#allocation10 + $0x978] sm:$0xff]
      %v1046 = vld [vmem:[#allocation10 + $0x980] sm:$0xff]
      %v1047 = vld [vmem:[#allocation10 + $0x988] sm:$0xff]
      %v1048 = vld [vmem:[#allocation10 + $0x990] sm:$0xff]
      %v1049 = vld [vmem:[#allocation10 + $0x998] sm:$0xff]
      %v1050 = vld [vmem:[#allocation10 + $0x9a0] sm:$0xff]
      %v1051 = vld [vmem:[#allocation10 + $0x9a8] sm:$0xff]
      %v1052 = vld [vmem:[#allocation10 + $0x9b0] sm:$0xff]
      %v1053 = vld [vmem:[#allocation10 + $0x9b8] sm:$0xff]
      %v1054 = vld [vmem:[#allocation10 + $0x9c0] sm:$0xff]
      %v1055 = vld [vmem:[#allocation10 + $0x9c8] sm:$0xff]
      %v1056 = vld [vmem:[#allocation10 + $0x9d0] sm:$0xff]
      %v1057 = vld [vmem:[#allocation10 + $0x9d8] sm:$0xff]
      %v1058 = vld [vmem:[#allocation10 + $0x9e0] sm:$0xff]
      %v1059 = vld [vmem:[#allocation10 + $0x9e8] sm:$0xff]
      %v1060 = vld [vmem:[#allocation10 + $0x9f0] sm:$0xff]
      %v1061 = vld [vmem:[#allocation10 + $0x9f8] sm:$0xff]
      %v1062 = vld [vmem:[#allocation10 + $0xa00] sm:$0xff]
      %v1063 = vld [vmem:[#allocation10 + $0xa08] sm:$0xff]
      %v1064 = vld [vmem:[#allocation10 + $0xa10] sm:$0xff]
      %v1065 = vld [vmem:[#allocation10 + $0xa18] sm:$0xff]
      %v1066 = vld [vmem:[#allocation10 + $0xa20] sm:$0xff]
      %v1067 = vld [vmem:[#allocation10 + $0xa28] sm:$0xff]
      %v1068 = vld [vmem:[#allocation10 + $0xa30] sm:$0xff]
      %v1069 = vld [vmem:[#allocation10 + $0xa38] sm:$0xff]
      %v1070 = vld [vmem:[#allocation10 + $0xa40] sm:$0xff]
      %v1071 = vld [vmem:[#allocation10 + $0xa48] sm:$0xff]
      %v1072 = vld [vmem:[#allocation10 + $0xa50] sm:$0xff]
      %v1073 = vld [vmem:[#allocation10 + $0xa58] sm:$0xff]
      %v1074 = vld [vmem:[#allocation10 + $0xa60] sm:$0xff]
      %v1075 = vld [vmem:[#allocation10 + $0xa68] sm:$0xff]
      %v1076 = vld [vmem:[#allocation10 + $0xa70] sm:$0xff]
      %v1077 = vld [vmem:[#allocation10 + $0xa78] sm:$0xff]
      %v1078 = vld [vmem:[#allocation10 + $0xa80] sm:$0xff]
      %v1079 = vld [vmem:[#allocation10 + $0xa88] sm:$0xff]
      %v1080 = vld [vmem:[#allocation10 + $0xa90] sm:$0xff]
      %v1081 = vld [vmem:[#allocation10 + $0xa98] sm:$0xff]
      %v1082 = vld [vmem:[#allocation10 + $0xaa0] sm:$0xff]
      %v1083 = vld [vmem:[#allocation10 + $0xaa8] sm:$0xff]
      %v1084 = vld [vmem:[#allocation10 + $0xab0] sm:$0xff]
      %v1085 = vld [vmem:[#allocation10 + $0xab8] sm:$0xff]
      %v1086 = vld [vmem:[#allocation10 + $0xac0] sm:$0xff]
      %v1087 = vld [vmem:[#allocation10 + $0xac8] sm:$0xff]
      %v1088 = vld [vmem:[#allocation10 + $0xad0] sm:$0xff]
      %v1089 = vld [vmem:[#allocation10 + $0xad8] sm:$0xff]
      %v1090 = vld [vmem:[#allocation10 + $0xae0] sm:$0xff]
      %v1091 = vld [vmem:[#allocation10 + $0xae8] sm:$0xff]
      %v1092 = vld [vmem:[#allocation10 + $0xaf0] sm:$0xff]
      %v1093 = vld [vmem:[#allocation10 + $0xaf8] sm:$0xff]
      %v1094 = vld [vmem:[#allocation10 + $0xb00] sm:$0xff]
      %v1095 = vld [vmem:[#allocation10 + $0xb08] sm:$0xff]
      %v1096 = vld [vmem:[#allocation10 + $0xb10] sm:$0xff]
      %v1097 = vld [vmem:[#allocation10 + $0xb18] sm:$0xff]
      %v1098 = vld [vmem:[#allocation10 + $0xb20] sm:$0xff]
      %v1099 = vld [vmem:[#allocation10 + $0xb28] sm:$0xff]
      %v1100 = vld [vmem:[#allocation10 + $0xb30] sm:$0xff]
      %v1101 = vld [vmem:[#allocation10 + $0xb38] sm:$0xff]
      %v1102 = vld [vmem:[#allocation10 + $0xb40] sm:$0xff]
      %v1103 = vld [vmem:[#allocation10 + $0xb48] sm:$0xff]
      %v1104 = vld [vmem:[#allocation10 + $0xb50] sm:$0xff]
      %v1105 = vld [vmem:[#allocation10 + $0xb58] sm:$0xff]
      %v1106 = vld [vmem:[#allocation10 + $0xb60] sm:$0xff]
      %v1107 = vld [vmem:[#allocation10 + $0xb68] sm:$0xff]
      %v1108 = vld [vmem:[#allocation10 + $0xb70] sm:$0xff]
      %v1109 = vld [vmem:[#allocation10 + $0xb78] sm:$0xff]
      %v1110 = vld [vmem:[#allocation10 + $0xb80] sm:$0xff]
      %v1111 = vld [vmem:[#allocation10 + $0xb88] sm:$0xff]
      %v1112 = vld [vmem:[#allocation10 + $0xb90] sm:$0xff]
      %v1113 = vld [vmem:[#allocation10 + $0xb98] sm:$0xff]
      %v1114 = vld [vmem:[#allocation10 + $0xba0] sm:$0xff]
      %v1115 = vld [vmem:[#allocation10 + $0xba8] sm:$0xff]
      %v1116 = vld [vmem:[#allocation10 + $0xbb0] sm:$0xff]
      %v1117 = vld [vmem:[#allocation10 + $0xbb8] sm:$0xff]
      %v1118 = vld [vmem:[#allocation10 + $0xbc0] sm:$0xff]
      %v1119 = vld [vmem:[#allocation10 + $0xbc8] sm:$0xff]
      %v1120 = vld [vmem:[#allocation10 + $0xbd0] sm:$0xff]
      %v1121 = vld [vmem:[#allocation10 + $0xbd8] sm:$0xff]
      %v1122 = vld [vmem:[#allocation10 + $0xbe0] sm:$0xff]
      %v1123 = vld [vmem:[#allocation10 + $0xbe8] sm:$0xff]
      %v1124 = vld [vmem:[#allocation10 + $0xbf0] sm:$0xff]
      %v1125 = vld [vmem:[#allocation10 + $0xbf8] sm:$0xff]
      %v1126 = vld [vmem:[#allocation10 + $0xc00] sm:$0xff]
      %v1127 = vld [vmem:[#allocation10 + $0xc08] sm:$0xff]
      %v1128 = vld [vmem:[#allocation10 + $0xc10] sm:$0xff]
      %v1129 = vld [vmem:[#allocation10 + $0xc18] sm:$0xff]
      %v1130 = vld [vmem:[#allocation10 + $0xc20] sm:$0xff]
      %v1131 = vld [vmem:[#allocation10 + $0xc28] sm:$0xff]
      %v1132 = vld [vmem:[#allocation10 + $0xc30] sm:$0xff]
      %v1133 = vld [vmem:[#allocation10 + $0xc38] sm:$0xff]
      %v1134 = vld [vmem:[#allocation10 + $0xc40] sm:$0xff]
      %v1135 = vld [vmem:[#allocation10 + $0xc48] sm:$0xff]
      %v1136 = vld [vmem:[#allocation10 + $0xc50] sm:$0xff]
      %v1137 = vld [vmem:[#allocation10 + $0xc58] sm:$0xff]
      %v1138 = vld [vmem:[#allocation10 + $0xc60] sm:$0xff]
      %v1139 = vld [vmem:[#allocation10 + $0xc68] sm:$0xff]
      %v1140 = vld [vmem:[#allocation10 + $0xc70] sm:$0xff]
      %v1141 = vld [vmem:[#allocation10 + $0xc78] sm:$0xff]
      %v1142 = vld [vmem:[#allocation10 + $0xc80] sm:$0xff]
      %v1143 = vld [vmem:[#allocation10 + $0xc88] sm:$0xff]
      %v1144 = vld [vmem:[#allocation10 + $0xc90] sm:$0xff]
      %v1145 = vld [vmem:[#allocation10 + $0xc98] sm:$0xff]
      %v1146 = vld [vmem:[#allocation10 + $0xca0] sm:$0xff]
      %v1147 = vld [vmem:[#allocation10 + $0xca8] sm:$0xff]
      %v1148 = vld [vmem:[#allocation10 + $0xcb0] sm:$0xff]
      %v1149 = vld [vmem:[#allocation10 + $0xcb8] sm:$0xff]
      %v1150 = vld [vmem:[#allocation10 + $0xcc0] sm:$0xff]
      %v1151 = vld [vmem:[#allocation10 + $0xcc8] sm:$0xff]
      %v1152 = vld [vmem:[#allocation10 + $0xcd0] sm:$0xff]
      %v1153 = vld [vmem:[#allocation10 + $0xcd8] sm:$0xff]
      %v1154 = vld [vmem:[#allocation10 + $0xce0] sm:$0xff]
      %v1155 = vld [vmem:[#allocation10 + $0xce8] sm:$0xff]
      %v1156 = vld [vmem:[#allocation10 + $0xcf0] sm:$0xff]
      %v1157 = vld [vmem:[#allocation10 + $0xcf8] sm:$0xff]
      %v1158 = vld [vmem:[#allocation10 + $0xd00] sm:$0xff]
      %v1159 = vld [vmem:[#allocation10 + $0xd08] sm:$0xff]
      %v1160 = vld [vmem:[#allocation10 + $0xd10] sm:$0xff]
      %v1161 = vld [vmem:[#allocation10 + $0xd18] sm:$0xff]
      %v1162 = vld [vmem:[#allocation10 + $0xd20] sm:$0xff]
      %v1163 = vld [vmem:[#allocation10 + $0xd28] sm:$0xff]
      %v1164 = vld [vmem:[#allocation10 + $0xd30] sm:$0xff]
      %v1165 = vld [vmem:[#allocation10 + $0xd38] sm:$0xff]
      %v1166 = vld [vmem:[#allocation10 + $0xd40] sm:$0xff]
      %v1167 = vld [vmem:[#allocation10 + $0xd48] sm:$0xff]
      %v1168 = vld [vmem:[#allocation10 + $0xd50] sm:$0xff]
      %v1169 = vld [vmem:[#allocation10 + $0xd58] sm:$0xff]
      %v1170 = vld [vmem:[#allocation10 + $0xd60] sm:$0xff]
      %v1171 = vld [vmem:[#allocation10 + $0xd68] sm:$0xff]
      %v1172 = vld [vmem:[#allocation10 + $0xd70] sm:$0xff]
      %v1173 = vld [vmem:[#allocation10 + $0xd78] sm:$0xff]
      %v1174 = vld [vmem:[#allocation10 + $0xd80] sm:$0xff]
      %v1175 = vld [vmem:[#allocation10 + $0xd88] sm:$0xff]
      %v1176 = vld [vmem:[#allocation10 + $0xd90] sm:$0xff]
      %v1177 = vld [vmem:[#allocation10 + $0xd98] sm:$0xff]
      %v1178 = vld [vmem:[#allocation10 + $0xda0] sm:$0xff]
      %v1179 = vld [vmem:[#allocation10 + $0xda8] sm:$0xff]
      %v1180 = vld [vmem:[#allocation10 + $0xdb0] sm:$0xff]
      %v1181 = vld [vmem:[#allocation10 + $0xdb8] sm:$0xff]
      %v1182 = vld [vmem:[#allocation10 + $0xdc0] sm:$0xff]
      %v1183 = vld [vmem:[#allocation10 + $0xdc8] sm:$0xff]
      %v1184 = vld [vmem:[#allocation10 + $0xdd0] sm:$0xff]
      %v1185 = vld [vmem:[#allocation10 + $0xdd8] sm:$0xff]
      %v1186 = vld [vmem:[#allocation10 + $0xde0] sm:$0xff]
      %v1187 = vld [vmem:[#allocation10 + $0xde8] sm:$0xff]
      %v1188 = vld [vmem:[#allocation10 + $0xdf0] sm:$0xff]
      %v1189 = vld [vmem:[#allocation10 + $0xdf8] sm:$0xff]
      %v1190 = vld [vmem:[#allocation10 + $0xe00] sm:$0xff]
      %v1191 = vld [vmem:[#allocation10 + $0xe08] sm:$0xff]
      %v1192 = vld [vmem:[#allocation10 + $0xe10] sm:$0xff]
      %v1193 = vld [vmem:[#allocation10 + $0xe18] sm:$0xff]
      %v1194 = vld [vmem:[#allocation10 + $0xe20] sm:$0xff]
      %v1195 = vld [vmem:[#allocation10 + $0xe28] sm:$0xff]
      %v1196 = vld [vmem:[#allocation10 + $0xe30] sm:$0xff]
      %v1197 = vld [vmem:[#allocation10 + $0xe38] sm:$0xff]
      %v1198 = vld [vmem:[#allocation10 + $0xe40] sm:$0xff]
      %v1199 = vld [vmem:[#allocation10 + $0xe48] sm:$0xff]
      %v1200 = vld [vmem:[#allocation10 + $0xe50] sm:$0xff]
      %v1201 = vld [vmem:[#allocation10 + $0xe58] sm:$0xff]
      %v1202 = vld [vmem:[#allocation10 + $0xe60] sm:$0xff]
      %v1203 = vld [vmem:[#allocation10 + $0xe68] sm:$0xff]
      %v1204 = vld [vmem:[#allocation10 + $0xe70] sm:$0xff]
      %v1205 = vld [vmem:[#allocation10 + $0xe78] sm:$0xff]
      %v1206 = vld [vmem:[#allocation10 + $0xe80] sm:$0xff]
      %v1207 = vld [vmem:[#allocation10 + $0xe88] sm:$0xff]
      %v1208 = vld [vmem:[#allocation10 + $0xe90] sm:$0xff]
      %v1209 = vld [vmem:[#allocation10 + $0xe98] sm:$0xff]
      %v1210 = vld [vmem:[#allocation10 + $0xea0] sm:$0xff]
      %v1211 = vld [vmem:[#allocation10 + $0xea8] sm:$0xff]
      %v1212 = vld [vmem:[#allocation10 + $0xeb0] sm:$0xff]
      %v1213 = vld [vmem:[#allocation10 + $0xeb8] sm:$0xff]
      %v1214 = vld [vmem:[#allocation10 + $0xec0] sm:$0xff]
      %v1215 = vld [vmem:[#allocation10 + $0xec8] sm:$0xff]
      %v1216 = vld [vmem:[#allocation10 + $0xed0] sm:$0xff]
      %v1217 = vld [vmem:[#allocation10 + $0xed8] sm:$0xff]
      %v1218 = vld [vmem:[#allocation10 + $0xee0] sm:$0xff]
      %v1219 = vld [vmem:[#allocation10 + $0xee8] sm:$0xff]
      %v1220 = vld [vmem:[#allocation10 + $0xef0] sm:$0xff]
      %v1221 = vld [vmem:[#allocation10 + $0xef8] sm:$0xff]
      %v1222 = vld [vmem:[#allocation10 + $0xf00] sm:$0xff]
      %v1223 = vld [vmem:[#allocation10 + $0xf08] sm:$0xff]
      %v1224 = vld [vmem:[#allocation10 + $0xf10] sm:$0xff]
      %v1225 = vld [vmem:[#allocation10 + $0xf18] sm:$0xff]
      %v1226 = vld [vmem:[#allocation10 + $0xf20] sm:$0xff]
      %v1227 = vld [vmem:[#allocation10 + $0xf28] sm:$0xff]
      %v1228 = vld [vmem:[#allocation10 + $0xf30] sm:$0xff]
      %v1229 = vld [vmem:[#allocation10 + $0xf38] sm:$0xff]
      %v1230 = vld [vmem:[#allocation10 + $0xf40] sm:$0xff]
      %v1231 = vld [vmem:[#allocation10 + $0xf48] sm:$0xff]
      %v1232 = vld [vmem:[#allocation10 + $0xf50] sm:$0xff]
      %v1233 = vld [vmem:[#allocation10 + $0xf58] sm:$0xff]
      %v1234 = vld [vmem:[#allocation10 + $0xf60] sm:$0xff]
      %v1235 = vld [vmem:[#allocation10 + $0xf68] sm:$0xff]
      %v1236 = vld [vmem:[#allocation10 + $0xf70] sm:$0xff]
      %v1237 = vld [vmem:[#allocation10 + $0xf78] sm:$0xff]
      %v1238 = vld [vmem:[#allocation10 + $0xf80] sm:$0xff]
      %v1239 = vld [vmem:[#allocation10 + $0xf88] sm:$0xff]
      %v1240 = vld [vmem:[#allocation10 + $0xf90] sm:$0xff]
      %v1241 = vld [vmem:[#allocation10 + $0xf98] sm:$0xff]
      %v1242 = vld [vmem:[#allocation10 + $0xfa0] sm:$0xff]
      %v1243 = vld [vmem:[#allocation10 + $0xfa8] sm:$0xff]
      %v1244 = vld [vmem:[#allocation10 + $0xfb0] sm:$0xff]
      %v1245 = vld [vmem:[#allocation10 + $0xfb8] sm:$0xff]
      %v1246 = vld [vmem:[#allocation10 + $0xfc0] sm:$0xff]
      %v1247 = vld [vmem:[#allocation10 + $0xfc8] sm:$0xff]
      %v1248 = vld [vmem:[#allocation10 + $0xfd0] sm:$0xff]
      %v1249 = vld [vmem:[#allocation10 + $0xfd8] sm:$0xff]
      %v1250 = vld [vmem:[#allocation10 + $0xfe0] sm:$0xff]
      %v1251 = vld [vmem:[#allocation10 + $0xfe8] sm:$0xff]
      %v1252 = vld [vmem:[#allocation10 + $0xff0] sm:$0xff]
      %v1253 = vld [vmem:[#allocation10 + $0xff8] sm:$0xff]
      %v1254 = vld [vmem:[#allocation11] sm:$0xff]
      %v1256 = vlaneseq
      %v1257 = vshrl.u32 %v1256, 7
      %v1258 = vsub.s32 0, %v1257
      %v1259 = vrot.slane %v1254, %v1258
      %v1260 = vlaneseq
      %v1261 = vshrl.u32 %v1260, 7
      %v1262 = vsub.s32 1, %v1261
      %v1263 = vrot.slane %v1254, %v1262
      %v1264 = vlaneseq
      %v1265 = vshrl.u32 %v1264, 7
      %v1266 = vsub.s32 2, %v1265
      %v1267 = vrot.slane %v1254, %v1266
      %v1268 = vlaneseq
      %v1269 = vshrl.u32 %v1268, 7
      %v1270 = vsub.s32 3, %v1269
      %v1271 = vrot.slane %v1254, %v1270
      %v1272 = vlaneseq
      %v1273 = vshrl.u32 %v1272, 7
      %v1274 = vsub.s32 4, %v1273
      %v1275 = vrot.slane %v1254, %v1274
      %v1276 = vlaneseq
      %v1277 = vshrl.u32 %v1276, 7
      %v1278 = vsub.s32 5, %v1277
      %v1279 = vrot.slane %v1254, %v1278
      %v1280 = vlaneseq
      %v1281 = vshrl.u32 %v1280, 7
      %v1282 = vsub.s32 6, %v1281
      %v1283 = vrot.slane %v1254, %v1282
      %v1284 = vlaneseq
      %v1285 = vshrl.u32 %v1284, 7
      %v1286 = vsub.s32 7, %v1285
      %v1287 = vrot.slane %v1254, %v1286
      %v1297 = vcombine.high %v741, %v741
      %v1299 = vunpack.c.l.s4 1983009808
      %v1300 = vunpack.c.0.s8 %v1299
      %v1301 = vlaneseq
      %v1302 = vshrl.u32 %v1301, 7
      %v1303 = vsub.s32 %v1300, %v1302
      %v1304 = vrot.slane %v741, %v1303
      %v1306 = vunpack.c.l.s4 1983009808
      %v1307 = vunpack.c.0.s8 %v1306
      %v1308 = vlaneseq
      %v1309 = vshrl.u32 %v1308, 7
      %v1310 = vsub.s32 %v1307, %v1309
      %v1311 = vrot.slane %v1297, %v1310
      %v1312 = vcombine.high %v1304, %v1304
      %v1313 = vcombine.high %v1311, %v1311
      %1318 = vmatprep.subr.mxu0 %v743
      %1319 = vmatpush1.msra.mxu0 %v742
      %1320 = vmatprep.subr.mxu0 %v751
      %1321 = vmatpush1.msra.mxu0 %v750
      %1322 = vmatprep.subr.mxu0 %v759
      %1323 = vmatpush1.msra.mxu0 %v758
      %1324 = vmatprep.subr.mxu0 %v767
      %1325 = vmatpush1.msra.mxu0 %v766
      %1326 = vmatprep.subr.mxu0 %v775
      %1327 = vmatpush1.msra.mxu0 %v774
      %1328 = vmatprep.subr.mxu0 %v783
      %1329 = vmatpush1.msra.mxu0 %v782
      %1330 = vmatprep.subr.mxu0 %v791
      %1331 = vmatpush1.msra.mxu0 %v790
      %1332 = vmatprep.subr.mxu0 %v799
      %1333 = vmatpush1.msra.mxu0 %v798
      %1334 = vmatprep.subr.mxu0 %v807
      %1335 = vmatpush1.msra.mxu0 %v806
      %1336 = vmatprep.subr.mxu0 %v815
      %1337 = vmatpush1.msra.mxu0 %v814
      %1338 = vmatprep.subr.mxu0 %v823
      %1339 = vmatpush1.msra.mxu0 %v822
      %1340 = vmatprep.subr.mxu0 %v831
      %1341 = vmatpush1.msra.mxu0 %v830
      %1342 = vmatprep.subr.mxu0 %v839
      %1343 = vmatpush1.msra.mxu0 %v838
      %1344 = vmatprep.subr.mxu0 %v847
      %1345 = vmatpush1.msra.mxu0 %v846
      %1346 = vmatprep.subr.mxu0 %v855
      %1347 = vmatpush1.msra.mxu0 %v854
      %1348 = vmatprep.subr.mxu0 %v863
      %1349 = vmatpush1.msra.mxu0 %v862
      %1350 = vmatprep.subr.mxu0 %v871
      %1351 = vmatpush1.msra.mxu0 %v870
      %1352 = vmatprep.subr.mxu0 %v879
      %1353 = vmatpush1.msra.mxu0 %v878
      %1354 = vmatprep.subr.mxu0 %v887
      %1355 = vmatpush1.msra.mxu0 %v886
      %1356 = vmatprep.subr.mxu0 %v895
      %1357 = vmatpush1.msra.mxu0 %v894
      %1358 = vmatprep.subr.mxu0 %v903
      %1359 = vmatpush1.msra.mxu0 %v902
      %1360 = vmatprep.subr.mxu0 %v911
      %1361 = vmatpush1.msra.mxu0 %v910
      %1362 = vmatprep.subr.mxu0 %v919
      %1363 = vmatpush1.msra.mxu0 %v918
      %1364 = vmatprep.subr.mxu0 %v927
      %1365 = vmatpush1.msra.mxu0 %v926
      %1366 = vmatprep.subr.mxu0 %v935
      %1367 = vmatpush1.msra.mxu0 %v934
      %1368 = vmatprep.subr.mxu0 %v943
      %1369 = vmatpush1.msra.mxu0 %v942
      %1370 = vmatprep.subr.mxu0 %v951
      %1371 = vmatpush1.msra.mxu0 %v950
      %1372 = vmatprep.subr.mxu0 %v959
      %1373 = vmatpush1.msra.mxu0 %v958
      %1374 = vmatprep.subr.mxu0 %v967
      %1375 = vmatpush1.msra.mxu0 %v966
      %1376 = vmatprep.subr.mxu0 %v975
      %1377 = vmatpush1.msra.mxu0 %v974
      %1378 = vmatprep.subr.mxu0 %v983
      %1379 = vmatpush1.msra.mxu0 %v982
      %1380 = vmatprep.subr.mxu0 %v991
      %1381 = vmatpush1.msra.mxu0 %v990
      %1382 = vmatprep.mubr.f32.mxu0 %v1312
      %1383 = vmatmul.mubr.f32.gmra.mrb[0].mxu0 %v1304
      %v1384 = vpop.f32.mrb[0].mxu0
      %v1385 = vadd.f32 %v1259, %v1384
      %v1386 = vpop.f32.mrb[0].mxu0
      %v1387 = vadd.f32 %v1263, %v1386
      %1388 = vdwg.mxu0
      %1389 = vmatprep.subr.mxu0 %v999
      %1390 = vmatpush1.msra.mxu0 %v998
      %1391 = vmatprep.subr.mxu0 %v1007
      %1392 = vmatpush1.msra.mxu0 %v1006
      %1393 = vmatprep.subr.mxu0 %v1015
      %1394 = vmatpush1.msra.mxu0 %v1014
      %1395 = vmatprep.subr.mxu0 %v1023
      %1396 = vmatpush1.msra.mxu0 %v1022
      %1397 = vmatprep.subr.mxu0 %v1031
      %1398 = vmatpush1.msra.mxu0 %v1030
      %1399 = vmatprep.subr.mxu0 %v1039
      %1400 = vmatpush1.msra.mxu0 %v1038
      %1401 = vmatprep.subr.mxu0 %v1047
      %1402 = vmatpush1.msra.mxu0 %v1046
      %1403 = vmatprep.subr.mxu0 %v1055
      %1404 = vmatpush1.msra.mxu0 %v1054
      %1405 = vmatprep.subr.mxu0 %v1063
      %1406 = vmatpush1.msra.mxu0 %v1062
      %1407 = vmatprep.subr.mxu0 %v1071
      %1408 = vmatpush1.msra.mxu0 %v1070
      %1409 = vmatprep.subr.mxu0 %v1079
      %1410 = vmatpush1.msra.mxu0 %v1078
      %1411 = vmatprep.subr.mxu0 %v1087
      %1412 = vmatpush1.msra.mxu0 %v1086
      %1413 = vmatprep.subr.mxu0 %v1095
      %1414 = vmatpush1.msra.mxu0 %v1094
      %1415 = vmatprep.subr.mxu0 %v1103
      %1416 = vmatpush1.msra.mxu0 %v1102
      %1417 = vmatprep.subr.mxu0 %v1111
      %1418 = vmatpush1.msra.mxu0 %v1110
      %1419 = vmatprep.subr.mxu0 %v1119
      %1420 = vmatpush1.msra.mxu0 %v1118
      %1421 = vmatprep.subr.mxu0 %v1127
      %1422 = vmatpush1.msra.mxu0 %v1126
      %1423 = vmatprep.subr.mxu0 %v1135
      %1424 = vmatpush1.msra.mxu0 %v1134
      %1425 = vmatprep.subr.mxu0 %v1143
      %1426 = vmatpush1.msra.mxu0 %v1142
      %1427 = vmatprep.subr.mxu0 %v1151
      %1428 = vmatpush1.msra.mxu0 %v1150
      %1429 = vmatprep.subr.mxu0 %v1159
      %1430 = vmatpush1.msra.mxu0 %v1158
      %1431 = vmatprep.subr.mxu0 %v1167
      %1432 = vmatpush1.msra.mxu0 %v1166
      %1433 = vmatprep.subr.mxu0 %v1175
      %1434 = vmatpush1.msra.mxu0 %v1174
      %1435 = vmatprep.subr.mxu0 %v1183
      %1436 = vmatpush1.msra.mxu0 %v1182
      %1437 = vmatprep.subr.mxu0 %v1191
      %1438 = vmatpush1.msra.mxu0 %v1190
      %1439 = vmatprep.subr.mxu0 %v1199
      %1440 = vmatpush1.msra.mxu0 %v1198
      %1441 = vmatprep.subr.mxu0 %v1207
      %1442 = vmatpush1.msra.mxu0 %v1206
      %1443 = vmatprep.subr.mxu0 %v1215
      %1444 = vmatpush1.msra.mxu0 %v1214
      %1445 = vmatprep.subr.mxu0 %v1223
      %1446 = vmatpush1.msra.mxu0 %v1222
      %1447 = vmatprep.subr.mxu0 %v1231
      %1448 = vmatpush1.msra.mxu0 %v1230
      %1449 = vmatprep.subr.mxu0 %v1239
      %1450 = vmatpush1.msra.mxu0 %v1238
      %1451 = vmatprep.subr.mxu0 %v1247
      %1452 = vmatpush1.msra.mxu0 %v1246
      %1453 = vmatprep.mubr.f32.mxu0 %v1313
      %1454 = vmatmul.mubr.f32.gmra.mrb[0].mxu0 %v1311
      %v1455 = vpop.f32.mrb[0].mxu0
      %v1456 = vadd.f32 %v1385, %v1455
      %v1457 = vpop.f32.mrb[0].mxu0
      %v1458 = vadd.f32 %v1387, %v1457
      %1459 = vdwg.mxu0
      %1460 = vmatprep.subr.mxu0 %v745
      %1461 = vmatpush1.msra.mxu0 %v744
      %1462 = vmatprep.subr.mxu0 %v753
      %1463 = vmatpush1.msra.mxu0 %v752
      %1464 = vmatprep.subr.mxu0 %v761
      %1465 = vmatpush1.msra.mxu0 %v760
      %1466 = vmatprep.subr.mxu0 %v769
      %1467 = vmatpush1.msra.mxu0 %v768
      %1468 = vmatprep.subr.mxu0 %v777
      %1469 = vmatpush1.msra.mxu0 %v776
      %1470 = vmatprep.subr.mxu0 %v785
      %1471 = vmatpush1.msra.mxu0 %v784
      %1472 = vmatprep.subr.mxu0 %v793
      %1473 = vmatpush1.msra.mxu0 %v792
      %1474 = vmatprep.subr.mxu0 %v801
      %1475 = vmatpush1.msra.mxu0 %v800
      %1476 = vmatprep.subr.mxu0 %v809
      %1477 = vmatpush1.msra.mxu0 %v808
      %1478 = vmatprep.subr.mxu0 %v817
      %1479 = vmatpush1.msra.mxu0 %v816
      %1480 = vmatprep.subr.mxu0 %v825
      %1481 = vmatpush1.msra.mxu0 %v824
      %1482 = vmatprep.subr.mxu0 %v833
      %1483 = vmatpush1.msra.mxu0 %v832
      %1484 = vmatprep.subr.mxu0 %v841
      %1485 = vmatpush1.msra.mxu0 %v840
      %1486 = vmatprep.subr.mxu0 %v849
      %1487 = vmatpush1.msra.mxu0 %v848
      %1488 = vmatprep.subr.mxu0 %v857
      %1489 = vmatpush1.msra.mxu0 %v856
      %1490 = vmatprep.subr.mxu0 %v865
      %1491 = vmatpush1.msra.mxu0 %v864
      %1492 = vmatprep.subr.mxu0 %v873
      %1493 = vmatpush1.msra.mxu0 %v872
      %1494 = vmatprep.subr.mxu0 %v881
      %1495 = vmatpush1.msra.mxu0 %v880
      %1496 = vmatprep.subr.mxu0 %v889
      %1497 = vmatpush1.msra.mxu0 %v888
      %1498 = vmatprep.subr.mxu0 %v897
      %1499 = vmatpush1.msra.mxu0 %v896
      %1500 = vmatprep.subr.mxu0 %v905
      %1501 = vmatpush1.msra.mxu0 %v904
      %1502 = vmatprep.subr.mxu0 %v913
      %1503 = vmatpush1.msra.mxu0 %v912
      %1504 = vmatprep.subr.mxu0 %v921
      %1505 = vmatpush1.msra.mxu0 %v920
      %1506 = vmatprep.subr.mxu0 %v929
      %1507 = vmatpush1.msra.mxu0 %v928
      %1508 = vmatprep.subr.mxu0 %v937
      %1509 = vmatpush1.msra.mxu0 %v936
      %1510 = vmatprep.subr.mxu0 %v945
      %1511 = vmatpush1.msra.mxu0 %v944
      %1512 = vmatprep.subr.mxu0 %v953
      %1513 = vmatpush1.msra.mxu0 %v952
      %1514 = vmatprep.subr.mxu0 %v961
      %1515 = vmatpush1.msra.mxu0 %v960
      %1516 = vmatprep.subr.mxu0 %v969
      %1517 = vmatpush1.msra.mxu0 %v968
      %1518 = vmatprep.subr.mxu0 %v977
      %1519 = vmatpush1.msra.mxu0 %v976
      %1520 = vmatprep.subr.mxu0 %v985
      %1521 = vmatpush1.msra.mxu0 %v984
      %1522 = vmatprep.subr.mxu0 %v993
      %1523 = vmatpush1.msra.mxu0 %v992
      %1524 = vmatprep.mubr.f32.mxu0 %v1312
      %1525 = vmatmul.mubr.f32.gmra.mrb[0].mxu0 %v1304
      %v1526 = vpop.f32.mrb[0].mxu0
      %v1527 = vadd.f32 %v1267, %v1526
      %v1528 = vpop.f32.mrb[0].mxu0
      %v1529 = vadd.f32 %v1271, %v1528
      %1530 = vdwg.mxu0
      %1531 = vmatprep.subr.mxu0 %v1001
      %1532 = vmatpush1.msra.mxu0 %v1000
      %1533 = vmatprep.subr.mxu0 %v1009
      %1534 = vmatpush1.msra.mxu0 %v1008
      %1535 = vmatprep.subr.mxu0 %v1017
      %1536 = vmatpush1.msra.mxu0 %v1016
      %1537 = vmatprep.subr.mxu0 %v1025
      %1538 = vmatpush1.msra.mxu0 %v1024
      %1539 = vmatprep.subr.mxu0 %v1033
      %1540 = vmatpush1.msra.mxu0 %v1032
      %1541 = vmatprep.subr.mxu0 %v1041
      %1542 = vmatpush1.msra.mxu0 %v1040
      %1543 = vmatprep.subr.mxu0 %v1049
      %1544 = vmatpush1.msra.mxu0 %v1048
      %1545 = vmatprep.subr.mxu0 %v1057
      %1546 = vmatpush1.msra.mxu0 %v1056
      %1547 = vmatprep.subr.mxu0 %v1065
      %1548 = vmatpush1.msra.mxu0 %v1064
      %1549 = vmatprep.subr.mxu0 %v1073
      %1550 = vmatpush1.msra.mxu0 %v1072
      %1551 = vmatprep.subr.mxu0 %v1081
      %1552 = vmatpush1.msra.mxu0 %v1080
      %1553 = vmatprep.subr.mxu0 %v1089
      %1554 = vmatpush1.msra.mxu0 %v1088
      %1555 = vmatprep.subr.mxu0 %v1097
      %1556 = vmatpush1.msra.mxu0 %v1096
      %1557 = vmatprep.subr.mxu0 %v1105
      %1558 = vmatpush1.msra.mxu0 %v1104
      %1559 = vmatprep.subr.mxu0 %v1113
      %1560 = vmatpush1.msra.mxu0 %v1112
      %1561 = vmatprep.subr.mxu0 %v1121
      %1562 = vmatpush1.msra.mxu0 %v1120
      %1563 = vmatprep.subr.mxu0 %v1129
      %1564 = vmatpush1.msra.mxu0 %v1128
      %1565 = vmatprep.subr.mxu0 %v1137
      %1566 = vmatpush1.msra.mxu0 %v1136
      %1567 = vmatprep.subr.mxu0 %v1145
      %1568 = vmatpush1.msra.mxu0 %v1144
      %1569 = vmatprep.subr.mxu0 %v1153
      %1570 = vmatpush1.msra.mxu0 %v1152
      %1571 = vmatprep.subr.mxu0 %v1161
      %1572 = vmatpush1.msra.mxu0 %v1160
      %1573 = vmatprep.subr.mxu0 %v1169
      %1574 = vmatpush1.msra.mxu0 %v1168
      %1575 = vmatprep.subr.mxu0 %v1177
      %1576 = vmatpush1.msra.mxu0 %v1176
      %1577 = vmatprep.subr.mxu0 %v1185
      %1578 = vmatpush1.msra.mxu0 %v1184
      %1579 = vmatprep.subr.mxu0 %v1193
      %1580 = vmatpush1.msra.mxu0 %v1192
      %1581 = vmatprep.subr.mxu0 %v1201
      %1582 = vmatpush1.msra.mxu0 %v1200
      %1583 = vmatprep.subr.mxu0 %v1209
      %1584 = vmatpush1.msra.mxu0 %v1208
      %1585 = vmatprep.subr.mxu0 %v1217
      %1586 = vmatpush1.msra.mxu0 %v1216
      %1587 = vmatprep.subr.mxu0 %v1225
      %1588 = vmatpush1.msra.mxu0 %v1224
      %1589 = vmatprep.subr.mxu0 %v1233
      %1590 = vmatpush1.msra.mxu0 %v1232
      %1591 = vmatprep.subr.mxu0 %v1241
      %1592 = vmatpush1.msra.mxu0 %v1240
      %1593 = vmatprep.subr.mxu0 %v1249
      %1594 = vmatpush1.msra.mxu0 %v1248
      %1595 = vmatprep.mubr.f32.mxu0 %v1313
      %1596 = vmatmul.mubr.f32.gmra.mrb[0].mxu0 %v1311
      %v1597 = vpop.f32.mrb[0].mxu0
      %v1598 = vadd.f32 %v1527, %v1597
      %v1599 = vpop.f32.mrb[0].mxu0
      %v1600 = vadd.f32 %v1529, %v1599
      %1601 = vdwg.mxu0
      %1602 = vmatprep.subr.mxu0 %v747
      %1603 = vmatpush1.msra.mxu0 %v746
      %1604 = vmatprep.subr.mxu0 %v755
      %1605 = vmatpush1.msra.mxu0 %v754
      %1606 = vmatprep.subr.mxu0 %v763
      %1607 = vmatpush1.msra.mxu0 %v762
      %1608 = vmatprep.subr.mxu0 %v771
      %1609 = vmatpush1.msra.mxu0 %v770
      %1610 = vmatprep.subr.mxu0 %v779
      %1611 = vmatpush1.msra.mxu0 %v778
      %1612 = vmatprep.subr.mxu0 %v787
      %1613 = vmatpush1.msra.mxu0 %v786
      %1614 = vmatprep.subr.mxu0 %v795
      %1615 = vmatpush1.msra.mxu0 %v794
      %1616 = vmatprep.subr.mxu0 %v803
      %1617 = vmatpush1.msra.mxu0 %v802
      %1618 = vmatprep.subr.mxu0 %v811
      %1619 = vmatpush1.msra.mxu0 %v810
      %1620 = vmatprep.subr.mxu0 %v819
      %1621 = vmatpush1.msra.mxu0 %v818
      %1622 = vmatprep.subr.mxu0 %v827
      %1623 = vmatpush1.msra.mxu0 %v826
      %1624 = vmatprep.subr.mxu0 %v835
      %1625 = vmatpush1.msra.mxu0 %v834
      %1626 = vmatprep.subr.mxu0 %v843
      %1627 = vmatpush1.msra.mxu0 %v842
      %1628 = vmatprep.subr.mxu0 %v851
      %1629 = vmatpush1.msra.mxu0 %v850
      %1630 = vmatprep.subr.mxu0 %v859
      %1631 = vmatpush1.msra.mxu0 %v858
      %1632 = vmatprep.subr.mxu0 %v867
      %1633 = vmatpush1.msra.mxu0 %v866
      %1634 = vmatprep.subr.mxu0 %v875
      %1635 = vmatpush1.msra.mxu0 %v874
      %1636 = vmatprep.subr.mxu0 %v883
      %1637 = vmatpush1.msra.mxu0 %v882
      %1638 = vmatprep.subr.mxu0 %v891
      %1639 = vmatpush1.msra.mxu0 %v890
      %1640 = vmatprep.subr.mxu0 %v899
      %1641 = vmatpush1.msra.mxu0 %v898
      %1642 = vmatprep.subr.mxu0 %v907
      %1643 = vmatpush1.msra.mxu0 %v906
      %1644 = vmatprep.subr.mxu0 %v915
      %1645 = vmatpush1.msra.mxu0 %v914
      %1646 = vmatprep.subr.mxu0 %v923
      %1647 = vmatpush1.msra.mxu0 %v922
      %1648 = vmatprep.subr.mxu0 %v931
      %1649 = vmatpush1.msra.mxu0 %v930
      %1650 = vmatprep.subr.mxu0 %v939
      %1651 = vmatpush1.msra.mxu0 %v938
      %1652 = vmatprep.subr.mxu0 %v947
      %1653 = vmatpush1.msra.mxu0 %v946
      %1654 = vmatprep.subr.mxu0 %v955
      %1655 = vmatpush1.msra.mxu0 %v954
      %1656 = vmatprep.subr.mxu0 %v963
      %1657 = vmatpush1.msra.mxu0 %v962
      %1658 = vmatprep.subr.mxu0 %v971
      %1659 = vmatpush1.msra.mxu0 %v970
      %1660 = vmatprep.subr.mxu0 %v979
      %1661 = vmatpush1.msra.mxu0 %v978
      %1662 = vmatprep.subr.mxu0 %v987
      %1663 = vmatpush1.msra.mxu0 %v986
      %1664 = vmatprep.subr.mxu0 %v995
      %1665 = vmatpush1.msra.mxu0 %v994
      %1666 = vmatprep.mubr.f32.mxu0 %v1312
      %1667 = vmatmul.mubr.f32.gmra.mrb[0].mxu0 %v1304
      %v1668 = vpop.f32.mrb[0].mxu0
      %v1669 = vadd.f32 %v1275, %v1668
      %v1670 = vpop.f32.mrb[0].mxu0
      %v1671 = vadd.f32 %v1279, %v1670
      %1672 = vdwg.mxu0
      %1673 = vmatprep.subr.mxu0 %v1003
      %1674 = vmatpush1.msra.mxu0 %v1002
      %1675 = vmatprep.subr.mxu0 %v1011
      %1676 = vmatpush1.msra.mxu0 %v1010
      %1677 = vmatprep.subr.mxu0 %v1019
      %1678 = vmatpush1.msra.mxu0 %v1018
      %1679 = vmatprep.subr.mxu0 %v1027
      %1680 = vmatpush1.msra.mxu0 %v1026
      %1681 = vmatprep.subr.mxu0 %v1035
      %1682 = vmatpush1.msra.mxu0 %v1034
      %1683 = vmatprep.subr.mxu0 %v1043
      %1684 = vmatpush1.msra.mxu0 %v1042
      %1685 = vmatprep.subr.mxu0 %v1051
      %1686 = vmatpush1.msra.mxu0 %v1050
      %1687 = vmatprep.subr.mxu0 %v1059
      %1688 = vmatpush1.msra.mxu0 %v1058
      %1689 = vmatprep.subr.mxu0 %v1067
      %1690 = vmatpush1.msra.mxu0 %v1066
      %1691 = vmatprep.subr.mxu0 %v1075
      %1692 = vmatpush1.msra.mxu0 %v1074
      %1693 = vmatprep.subr.mxu0 %v1083
      %1694 = vmatpush1.msra.mxu0 %v1082
      %1695 = vmatprep.subr.mxu0 %v1091
      %1696 = vmatpush1.msra.mxu0 %v1090
      %1697 = vmatprep.subr.mxu0 %v1099
      %1698 = vmatpush1.msra.mxu0 %v1098
      %1699 = vmatprep.subr.mxu0 %v1107
      %1700 = vmatpush1.msra.mxu0 %v1106
      %1701 = vmatprep.subr.mxu0 %v1115
      %1702 = vmatpush1.msra.mxu0 %v1114
      %1703 = vmatprep.subr.mxu0 %v1123
      %1704 = vmatpush1.msra.mxu0 %v1122
      %1705 = vmatprep.subr.mxu0 %v1131
      %1706 = vmatpush1.msra.mxu0 %v1130
      %1707 = vmatprep.subr.mxu0 %v1139
      %1708 = vmatpush1.msra.mxu0 %v1138
      %1709 = vmatprep.subr.mxu0 %v1147
      %1710 = vmatpush1.msra.mxu0 %v1146
      %1711 = vmatprep.subr.mxu0 %v1155
      %1712 = vmatpush1.msra.mxu0 %v1154
      %1713 = vmatprep.subr.mxu0 %v1163
      %1714 = vmatpush1.msra.mxu0 %v1162
      %1715 = vmatprep.subr.mxu0 %v1171
      %1716 = vmatpush1.msra.mxu0 %v1170
      %1717 = vmatprep.subr.mxu0 %v1179
      %1718 = vmatpush1.msra.mxu0 %v1178
      %1719 = vmatprep.subr.mxu0 %v1187
      %1720 = vmatpush1.msra.mxu0 %v1186
      %1721 = vmatprep.subr.mxu0 %v1195
      %1722 = vmatpush1.msra.mxu0 %v1194
      %1723 = vmatprep.subr.mxu0 %v1203
      %1724 = vmatpush1.msra.mxu0 %v1202
      %1725 = vmatprep.subr.mxu0 %v1211
      %1726 = vmatpush1.msra.mxu0 %v1210
      %1727 = vmatprep.subr.mxu0 %v1219
      %1728 = vmatpush1.msra.mxu0 %v1218
      %1729 = vmatprep.subr.mxu0 %v1227
      %1730 = vmatpush1.msra.mxu0 %v1226
      %1731 = vmatprep.subr.mxu0 %v1235
      %1732 = vmatpush1.msra.mxu0 %v1234
      %1733 = vmatprep.subr.mxu0 %v1243
      %1734 = vmatpush1.msra.mxu0 %v1242
      %1735 = vmatprep.subr.mxu0 %v1251
      %1736 = vmatpush1.msra.mxu0 %v1250
      %1737 = vmatprep.mubr.f32.mxu0 %v1313
      %1738 = vmatmul.mubr.f32.gmra.mrb[0].mxu0 %v1311
      %v1739 = vpop.f32.mrb[0].mxu0
      %v1740 = vadd.f32 %v1669, %v1739
      %v1741 = vpop.f32.mrb[0].mxu0
      %v1742 = vadd.f32 %v1671, %v1741
      %1743 = vdwg.mxu0
      %1744 = vmatprep.subr.mxu0 %v749
      %1745 = vmatpush1.msra.mxu0 %v748
      %1746 = vmatprep.subr.mxu0 %v757
      %1747 = vmatpush1.msra.mxu0 %v756
      %1748 = vmatprep.subr.mxu0 %v765
      %1749 = vmatpush1.msra.mxu0 %v764
      %1750 = vmatprep.subr.mxu0 %v773
      %1751 = vmatpush1.msra.mxu0 %v772
      %1752 = vmatprep.subr.mxu0 %v781
      %1753 = vmatpush1.msra.mxu0 %v780
      %1754 = vmatprep.subr.mxu0 %v789
      %1755 = vmatpush1.msra.mxu0 %v788
      %1756 = vmatprep.subr.mxu0 %v797
      %1757 = vmatpush1.msra.mxu0 %v796
      %1758 = vmatprep.subr.mxu0 %v805
      %1759 = vmatpush1.msra.mxu0 %v804
      %1760 = vmatprep.subr.mxu0 %v813
      %1761 = vmatpush1.msra.mxu0 %v812
      %1762 = vmatprep.subr.mxu0 %v821
      %1763 = vmatpush1.msra.mxu0 %v820
      %1764 = vmatprep.subr.mxu0 %v829
      %1765 = vmatpush1.msra.mxu0 %v828
      %1766 = vmatprep.subr.mxu0 %v837
      %1767 = vmatpush1.msra.mxu0 %v836
      %1768 = vmatprep.subr.mxu0 %v845
      %1769 = vmatpush1.msra.mxu0 %v844
      %1770 = vmatprep.subr.mxu0 %v853
      %1771 = vmatpush1.msra.mxu0 %v852
      %1772 = vmatprep.subr.mxu0 %v861
      %1773 = vmatpush1.msra.mxu0 %v860
      %1774 = vmatprep.subr.mxu0 %v869
      %1775 = vmatpush1.msra.mxu0 %v868
      %1776 = vmatprep.subr.mxu0 %v877
      %1777 = vmatpush1.msra.mxu0 %v876
      %1778 = vmatprep.subr.mxu0 %v885
      %1779 = vmatpush1.msra.mxu0 %v884
      %1780 = vmatprep.subr.mxu0 %v893
      %1781 = vmatpush1.msra.mxu0 %v892
      %1782 = vmatprep.subr.mxu0 %v901
      %1783 = vmatpush1.msra.mxu0 %v900
      %1784 = vmatprep.subr.mxu0 %v909
      %1785 = vmatpush1.msra.mxu0 %v908
      %1786 = vmatprep.subr.mxu0 %v917
      %1787 = vmatpush1.msra.mxu0 %v916
      %1788 = vmatprep.subr.mxu0 %v925
      %1789 = vmatpush1.msra.mxu0 %v924
      %1790 = vmatprep.subr.mxu0 %v933
      %1791 = vmatpush1.msra.mxu0 %v932
      %1792 = vmatprep.subr.mxu0 %v941
      %1793 = vmatpush1.msra.mxu0 %v940
      %1794 = vmatprep.subr.mxu0 %v949
      %1795 = vmatpush1.msra.mxu0 %v948
      %1796 = vmatprep.subr.mxu0 %v957
      %1797 = vmatpush1.msra.mxu0 %v956
      %1798 = vmatprep.subr.mxu0 %v965
      %1799 = vmatpush1.msra.mxu0 %v964
      %1800 = vmatprep.subr.mxu0 %v973
      %1801 = vmatpush1.msra.mxu0 %v972
      %1802 = vmatprep.subr.mxu0 %v981
      %1803 = vmatpush1.msra.mxu0 %v980
      %1804 = vmatprep.subr.mxu0 %v989
      %1805 = vmatpush1.msra.mxu0 %v988
      %1806 = vmatprep.subr.mxu0 %v997
      %1807 = vmatpush1.msra.mxu0 %v996
      %1808 = vmatprep.mubr.f32.mxu0 %v1312
      %1809 = vmatmul.mubr.f32.gmra.mrb[0].mxu0 %v1304
      %v1810 = vpop.f32.mrb[0].mxu0
      %v1811 = vadd.f32 %v1283, %v1810
      %v1812 = vpop.f32.mrb[0].mxu0
      %v1813 = vadd.f32 %v1287, %v1812
      %1814 = vdwg.mxu0
      %1815 = vmatprep.subr.mxu0 %v1005
      %1816 = vmatpush1.msra.mxu0 %v1004
      %1817 = vmatprep.subr.mxu0 %v1013
      %1818 = vmatpush1.msra.mxu0 %v1012
      %1819 = vmatprep.subr.mxu0 %v1021
      %1820 = vmatpush1.msra.mxu0 %v1020
      %1821 = vmatprep.subr.mxu0 %v1029
      %1822 = vmatpush1.msra.mxu0 %v1028
      %1823 = vmatprep.subr.mxu0 %v1037
      %1824 = vmatpush1.msra.mxu0 %v1036
      %1825 = vmatprep.subr.mxu0 %v1045
      %1826 = vmatpush1.msra.mxu0 %v1044
      %1827 = vmatprep.subr.mxu0 %v1053
      %1828 = vmatpush1.msra.mxu0 %v1052
      %1829 = vmatprep.subr.mxu0 %v1061
      %1830 = vmatpush1.msra.mxu0 %v1060
      %1831 = vmatprep.subr.mxu0 %v1069
      %1832 = vmatpush1.msra.mxu0 %v1068
      %1833 = vmatprep.subr.mxu0 %v1077
      %1834 = vmatpush1.msra.mxu0 %v1076
      %1835 = vmatprep.subr.mxu0 %v1085
      %1836 = vmatpush1.msra.mxu0 %v1084
      %1837 = vmatprep.subr.mxu0 %v1093
      %1838 = vmatpush1.msra.mxu0 %v1092
      %1839 = vmatprep.subr.mxu0 %v1101
      %1840 = vmatpush1.msra.mxu0 %v1100
      %1841 = vmatprep.subr.mxu0 %v1109
      %1842 = vmatpush1.msra.mxu0 %v1108
      %1843 = vmatprep.subr.mxu0 %v1117
      %1844 = vmatpush1.msra.mxu0 %v1116
      %1845 = vmatprep.subr.mxu0 %v1125
      %1846 = vmatpush1.msra.mxu0 %v1124
      %1847 = vmatprep.subr.mxu0 %v1133
      %1848 = vmatpush1.msra.mxu0 %v1132
      %1849 = vmatprep.subr.mxu0 %v1141
      %1850 = vmatpush1.msra.mxu0 %v1140
      %1851 = vmatprep.subr.mxu0 %v1149
      %1852 = vmatpush1.msra.mxu0 %v1148
      %1853 = vmatprep.subr.mxu0 %v1157
      %1854 = vmatpush1.msra.mxu0 %v1156
      %1855 = vmatprep.subr.mxu0 %v1165
      %1856 = vmatpush1.msra.mxu0 %v1164
      %1857 = vmatprep.subr.mxu0 %v1173
      %1858 = vmatpush1.msra.mxu0 %v1172
      %1859 = vmatprep.subr.mxu0 %v1181
      %1860 = vmatpush1.msra.mxu0 %v1180
      %1861 = vmatprep.subr.mxu0 %v1189
      %1862 = vmatpush1.msra.mxu0 %v1188
      %1863 = vmatprep.subr.mxu0 %v1197
      %1864 = vmatpush1.msra.mxu0 %v1196
      %1865 = vmatprep.subr.mxu0 %v1205
      %1866 = vmatpush1.msra.mxu0 %v1204
      %1867 = vmatprep.subr.mxu0 %v1213
      %1868 = vmatpush1.msra.mxu0 %v1212
      %1869 = vmatprep.subr.mxu0 %v1221
      %1870 = vmatpush1.msra.mxu0 %v1220
      %1871 = vmatprep.subr.mxu0 %v1229
      %1872 = vmatpush1.msra.mxu0 %v1228
      %1873 = vmatprep.subr.mxu0 %v1237
      %1874 = vmatpush1.msra.mxu0 %v1236
      %1875 = vmatprep.subr.mxu0 %v1245
      %1876 = vmatpush1.msra.mxu0 %v1244
      %1877 = vmatprep.subr.mxu0 %v1253
      %1878 = vmatpush1.msra.mxu0 %v1252
      %1879 = vmatprep.mubr.f32.mxu0 %v1313
      %1880 = vmatmul.mubr.f32.gmra.mrb[0].mxu0 %v1311
      %v1881 = vpop.f32.mrb[0].mxu0
      %v1882 = vadd.f32 %v1811, %v1881
      %v1883 = vpop.f32.mrb[0].mxu0
      %v1884 = vadd.f32 %v1813, %v1883
      %1885 = vdwg.mxu0
      %v1886 = vld [vmem:[#allocation4] sm:$0xf]
      %v1887 = vxor.u32 %v1456, 2147483648
      %v1888 = vxor.u32 %v1458, 2147483648
      %v1889 = vxor.u32 %v1598, 2147483648
      %v1890 = vxor.u32 %v1600, 2147483648
      %v1891 = vxor.u32 %v1740, 2147483648
      %v1892 = vxor.u32 %v1742, 2147483648
      %v1893 = vmul.f32 %v1887, 1.442695
      %v1894 = vpow.pop %v1893
      %v1895 = vmul.f32 %v1888, 1.442695
      %v1896 = vpow.pop %v1895
      %v1897 = vmul.f32 %v1889, 1.442695
      %v1898 = vpow.pop %v1897
      %v1899 = vmul.f32 %v1890, 1.442695
      %v1900 = vpow.pop %v1899
      %v1901 = vmul.f32 %v1891, 1.442695
      %v1902 = vpow.pop %v1901
      %v1903 = vmul.f32 %v1892, 1.442695
      %v1904 = vpow.pop %v1903
      %v1905 = vadd.f32 %v1894, 1.0
      %v1906 = vadd.f32 %v1896, 1.0
      %v1907 = vadd.f32 %v1898, 1.0
      %v1908 = vadd.f32 %v1900, 1.0
      %v1909 = vadd.f32 %v1902, 1.0
      %v1910 = vadd.f32 %v1904, 1.0
      %v1911 = vrcp.pop %v1905
      %v1912 = vmul.f32 1.0, %v1911
      %v1913 = vrcp.pop %v1906
      %v1914 = vmul.f32 1.0, %v1913
      %v1915 = vrcp.pop %v1907
      %v1916 = vmul.f32 1.0, %v1915
      %v1917 = vrcp.pop %v1908
      %v1918 = vmul.f32 1.0, %v1917
      %v1919 = vrcp.pop %v1909
      %v1920 = vmul.f32 1.0, %v1919
      %v1921 = vrcp.pop %v1910
      %v1922 = vmul.f32 1.0, %v1921
      %v1923 = vtanh.pop %v1882
      %v1924 = vtanh.pop %v1884
      %v1927 = vunpack.c.l.s4 1983009808
      %v1928 = vunpack.c.0.s8 %v1927
      %v1929 = vlaneseq
      %v1930 = vshrl.u32 %v1929, 7
      %v1931 = vsub.s32 %v1928, %v1930
      %v1932 = vrot.slane %v1886, %v1931
      %v1933 = vcombine.high %v1932, %v1932
      %v1936 = vmul.f32 %v1916, %v1932
      %v1937 = vmul.f32 %v1918, %v1933
      %v1938 = vmul.f32 %v1912, %v1923
      %v1939 = vmul.f32 %v1914, %v1924
      %v1940 = vadd.f32 %v1936, %v1938
      %v1941 = vadd.f32 %v1937, %v1939
      %v1942 = vtanh.pop %v1940
      %v1943 = vtanh.pop %v1941
      %v1944 = vmul.f32 %v1920, %v1942
      %v1945 = vmul.f32 %v1922, %v1943
      %v1948 = vcombine.low %v1944, %v1945
      %v1950 = vunpack.c.l.s4 1983009808
      %v1951 = vunpack.c.0.s8 %v1950
      %v1952 = vlaneseq
      %v1953 = vshrl.u32 %v1952, 7
      %v1954 = vsub.s32 %v1951, %v1953
      %v1955 = vrot.slane %v1948, %v1954
      %1957 = vst [vmem:[#allocation2 + $0x4] sm:$0xf] %v1955
      %v1960 = vcombine.low %v1940, %v1941
      %v1962 = vunpack.c.l.s4 1983009808
      %v1963 = vunpack.c.0.s8 %v1962
      %v1964 = vlaneseq
      %v1965 = vshrl.u32 %v1964, 7
      %v1966 = vsub.s32 %v1963, %v1965
      %v1967 = vrot.slane %v1960, %v1966
      %1969 = vst [vmem:[#allocation4] sm:$0xf] %v1967
    $region54: #{tpu_custom_call.1} parent=1 // loop_footer
      %s110 = sadd.s32 1, %s106
    $region55: #{tpu_custom_call.1} parent=1 // loop_footer_branch
      %105 = sbr.rel target = $region51
    $region56: #{tpu_custom_call.1} parent=1 // loop_exit
      _
    %v1970 = vld [vmem:[#allocation2 + $0x4] sm:$0xf]
    %v1971 = vld [vmem:[#allocation13] sm:$0xff]
    %v1972 = vld [vmem:[#allocation13 + $0x8] sm:$0xff]
    %v1973 = vld [vmem:[#allocation13 + $0x10] sm:$0xff]
    %v1974 = vld [vmem:[#allocation13 + $0x18] sm:$0xff]
    %v1975 = vld [vmem:[#allocation13 + $0x20] sm:$0xff]
    %v1976 = vld [vmem:[#allocation13 + $0x28] sm:$0xff]
    %v1977 = vld [vmem:[#allocation13 + $0x30] sm:$0xff]
    %v1978 = vld [vmem:[#allocation13 + $0x38] sm:$0xff]
    %v1979 = vld [vmem:[#allocation13 + $0x40] sm:$0xff]
    %v1980 = vld [vmem:[#allocation13 + $0x48] sm:$0xff]
    %v1981 = vld [vmem:[#allocation13 + $0x50] sm:$0xff]
    %v1982 = vld [vmem:[#allocation13 + $0x58] sm:$0xff]
    %v1983 = vld [vmem:[#allocation13 + $0x60] sm:$0xff]
    %v1984 = vld [vmem:[#allocation13 + $0x68] sm:$0xff]
    %v1985 = vld [vmem:[#allocation13 + $0x70] sm:$0xff]
    %v1986 = vld [vmem:[#allocation13 + $0x78] sm:$0xff]
    %v1987 = vld [vmem:[#allocation13 + $0x80] sm:$0xff]
    %v1988 = vld [vmem:[#allocation13 + $0x88] sm:$0xff]
    %v1989 = vld [vmem:[#allocation13 + $0x90] sm:$0xff]
    %v1990 = vld [vmem:[#allocation13 + $0x98] sm:$0xff]
    %v1991 = vld [vmem:[#allocation13 + $0xa0] sm:$0xff]
    %v1992 = vld [vmem:[#allocation13 + $0xa8] sm:$0xff]
    %v1993 = vld [vmem:[#allocation13 + $0xb0] sm:$0xff]
    %v1994 = vld [vmem:[#allocation13 + $0xb8] sm:$0xff]
    %v1995 = vld [vmem:[#allocation13 + $0xc0] sm:$0xff]
    %v1996 = vld [vmem:[#allocation13 + $0xc8] sm:$0xff]
    %v1997 = vld [vmem:[#allocation13 + $0xd0] sm:$0xff]
    %v1998 = vld [vmem:[#allocation13 + $0xd8] sm:$0xff]
    %v1999 = vld [vmem:[#allocation13 + $0xe0] sm:$0xff]
    %v2000 = vld [vmem:[#allocation13 + $0xe8] sm:$0xff]
    %v2001 = vld [vmem:[#allocation13 + $0xf0] sm:$0xff]
    %v2002 = vld [vmem:[#allocation13 + $0xf8] sm:$0xff]
    %v2003 = vld [vmem:[#allocation14] sm:$0x1]
    %v2005 = vlaneseq
    %v2006 = vshrl.u32 %v2005, 7
    %v2007 = vsub.s32 0, %v2006
    %v2008 = vrot.slane %v2003, %v2007
    %v2012 = vunpack.c.l.s4 1983009808
    %v2013 = vunpack.c.0.s8 %v2012
    %v2014 = vlaneseq
    %v2015 = vshrl.u32 %v2014, 7
    %v2016 = vsub.s32 %v2013, %v2015
    %v2017 = vrot.slane %v1970, %v2016
    %v2018 = vcombine.high %v2017, %v2017
    %2021 = vmatprep.subr.mxu0 0.0
    %2022 = vmatpush1.msra.mxu0 %v1971
    %2023 = vmatprep.subr.mxu0 0.0
    %2024 = vmatpush1.msra.mxu0 %v1972
    %2025 = vmatprep.subr.mxu0 0.0
    %2026 = vmatpush1.msra.mxu0 %v1973
    %2027 = vmatprep.subr.mxu0 0.0
    %2028 = vmatpush1.msra.mxu0 %v1974
    %2029 = vmatprep.subr.mxu0 0.0
    %2030 = vmatpush1.msra.mxu0 %v1975
    %2031 = vmatprep.subr.mxu0 0.0
    %2032 = vmatpush1.msra.mxu0 %v1976
    %2033 = vmatprep.subr.mxu0 0.0
    %2034 = vmatpush1.msra.mxu0 %v1977
    %2035 = vmatprep.subr.mxu0 0.0
    %2036 = vmatpush1.msra.mxu0 %v1978
    %2037 = vmatprep.subr.mxu0 0.0
    %2038 = vmatpush1.msra.mxu0 %v1979
    %2039 = vmatprep.subr.mxu0 0.0
    %2040 = vmatpush1.msra.mxu0 %v1980
    %2041 = vmatprep.subr.mxu0 0.0
    %2042 = vmatpush1.msra.mxu0 %v1981
    %2043 = vmatprep.subr.mxu0 0.0
    %2044 = vmatpush1.msra.mxu0 %v1982
    %2045 = vmatprep.subr.mxu0 0.0
    %2046 = vmatpush1.msra.mxu0 %v1983
    %2047 = vmatprep.subr.mxu0 0.0
    %2048 = vmatpush1.msra.mxu0 %v1984
    %2049 = vmatprep.subr.mxu0 0.0
    %2050 = vmatpush1.msra.mxu0 %v1985
    %2051 = vmatprep.subr.mxu0 0.0
    %2052 = vmatpush1.msra.mxu0 %v1986
    %2053 = vmatprep.subr.mxu0 0.0
    %2054 = vmatpush1.msra.mxu0 %v1987
    %2055 = vmatprep.subr.mxu0 0.0
    %2056 = vmatpush1.msra.mxu0 %v1988
    %2057 = vmatprep.subr.mxu0 0.0
    %2058 = vmatpush1.msra.mxu0 %v1989
    %2059 = vmatprep.subr.mxu0 0.0
    %2060 = vmatpush1.msra.mxu0 %v1990
    %2061 = vmatprep.subr.mxu0 0.0
    %2062 = vmatpush1.msra.mxu0 %v1991
    %2063 = vmatprep.subr.mxu0 0.0
    %2064 = vmatpush1.msra.mxu0 %v1992
    %2065 = vmatprep.subr.mxu0 0.0
    %2066 = vmatpush1.msra.mxu0 %v1993
    %2067 = vmatprep.subr.mxu0 0.0
    %2068 = vmatpush1.msra.mxu0 %v1994
    %2069 = vmatprep.subr.mxu0 0.0
    %2070 = vmatpush1.msra.mxu0 %v1995
    %2071 = vmatprep.subr.mxu0 0.0
    %2072 = vmatpush1.msra.mxu0 %v1996
    %2073 = vmatprep.subr.mxu0 0.0
    %2074 = vmatpush1.msra.mxu0 %v1997
    %2075 = vmatprep.subr.mxu0 0.0
    %2076 = vmatpush1.msra.mxu0 %v1998
    %2077 = vmatprep.subr.mxu0 0.0
    %2078 = vmatpush1.msra.mxu0 %v1999
    %2079 = vmatprep.subr.mxu0 0.0
    %2080 = vmatpush1.msra.mxu0 %v2000
    %2081 = vmatprep.subr.mxu0 0.0
    %2082 = vmatpush1.msra.mxu0 %v2001
    %2083 = vmatprep.subr.mxu0 0.0
    %2084 = vmatpush1.msra.mxu0 %v2002
    %2085 = vmatprep.mubr.f32.mxu0 %v2018
    %2086 = vmatmul.mubr.f32.gmra.mrb[0].mxu0 %v2017
    %v2087 = vpop.f32.mrb[0].mxu0
    %v2088 = vadd.f32 %v2008, %v2087
    %v2089 = vpop.f32.mrb[0].mxu0
    %2090 = vdwg.mxu0
    %2091 = vst [vmem:[#allocation16] sm:$0x3] %v2088
    // Predicated region
    $region57: #{tpu_custom_call.1} parent=1 // pred_check
      _
    $region58: #{tpu_custom_call.1} parent=1 // pred_check_branch
      %2093 = sbr.rel (0) target = $region60
    $region59: #{tpu_custom_call.1} parent=1 // pred_region
      %s2095 = ssub.s32 32, 32
      %2096 = vsyncadd [#allocation7], %s2095
      %s2098 = sshll.u32 [#allocation16], 4
      %s2099 = int_to_ptr.vmem [resolvable:$true] %s2098
      %2101 = dma.vmem_to_hbm [thread:$0]  %s2099, 32, %s6, [#allocation7]
    $region60: #{tpu_custom_call.1} parent=1 // pred_fallthru
      _
    // Predicated region
    $region61: #{tpu_custom_call.1} parent=1 // pred_check
      _
    $region62: #{tpu_custom_call.1} parent=1 // pred_check_branch
      %2103 = sbr.rel (0) target = $region64
    $region63: #{tpu_custom_call.1} parent=1 // pred_region
      %2104 = dma.done [#allocation7], 32
    $region64: #{tpu_custom_call.1} parent=1 // pred_fallthru
      _
    %2105 = vsyncpa [#allocation6], 1
    %2106 = vsyncpa [#allocation9], 1
    %2107 = vsyncpa [#allocation12], 1
    %2108 = vsyncpa [#allocation15], 1
    %2109 = vsyncpa [#allocation7], 1

</llo_original>
